<compile_context>
chip_gen: v7x
topology: tpu7x:2x2x1
jax: 0.10.0
libtpu: 0.0.40
codegen_flags: <defaults>
</compile_context>

<pallas_src>
import math

import jax
import jax.numpy as jnp
from jax.experimental import pallas as pl
from jax.experimental.pallas import tpu as pltpu  # noqa: F401  (TPU backend)

_DEG2RAD = math.pi / 180.0

HPAD = 128        # hidden width padded 32 -> 128 (zero cols/rows; exact math)
POSE_PAD = 128    # pose-feature rows of fc1 padded 16 -> 128
OUT_PAD = 128     # fc3 / kernel-output lanes padded to 128 (lane-dense store)
N_POSE_FLAT = 16  # flattened 4x4 homogeneous matrix


# -----------------------------------------------------------------------------
# In-kernel helpers (pure jnp, traced inside the Pallas body)
# -----------------------------------------------------------------------------
def _rot_entries(phi_deg, theta_deg, psi_deg, off_x, off_y):
    """16 row-major entries of the homogeneous transform, each shaped (B, 1).

    Intrinsic ZYZ rotation (degrees) right-multiplied by
    make_translation(-offset_y, -offset_x).
    """
    phi = phi_deg * _DEG2RAD
    theta = theta_deg * _DEG2RAD
    psi = psi_deg * _DEG2RAD
    c1, s1 = jnp.cos(phi), jnp.sin(phi)
    c2, s2 = jnp.cos(theta), jnp.sin(theta)
    c3, s3 = jnp.cos(psi), jnp.sin(psi)

    # R = Rz(phi) @ Ry(theta) @ Rz(psi)  (intrinsic ZYZ)
    r00 = c1 * c2 * c3 - s1 * s3
    r01 = -c1 * c2 * s3 - s1 * c3
    r02 = c1 * s2
    r10 = s1 * c2 * c3 + c1 * s3
    r11 = -s1 * c2 * s3 + c1 * c3
    r12 = s1 * s2
    r20 = -s2 * c3
    r21 = s2 * s3
    r22 = c2

    # translation = make_translation(-t_y, -t_x): translate by (-off_y, -off_x, 0);
    # R_h @ T folds the rotated translation into the last column.
    # TODO(synk): verify the x/y argument convention of transform.make_translation
    #             against the original source (self-consistent with the reference here).
    tx = -off_y
    ty = -off_x
    m03 = r00 * tx + r01 * ty
    m13 = r10 * tx + r11 * ty
    m23 = r20 * tx + r21 * ty

    zero = jnp.zeros_like(phi)
    one = jnp.ones_like(phi)
    return [r00, r01, r02, m03,
            r10, r11, r12, m13,
            r20, r21, r22, m23,
            zero, zero, zero, one]


def _assemble_lanes(values, width):
    """Scatter values[j] ((B,1) each) into lane j of a lane-dense (B, width) array.

    Uses iota-compare + select (VPU) instead of a 16-way lane concatenate, so the
    result is one dense vreg slab (no XLU shuffle chain, no masked partial store).
    """
    lane = jax.lax.broadcasted_iota(jnp.int32, (1, width), 1)
    acc = jnp.zeros((values[0].shape[0], width), jnp.float32)
    for j, v in enumerate(values):
        acc = acc + jnp.where(lane == j, v, 0.0)
    return acc


# -----------------------------------------------------------------------------
# Fused kernel: transform -> MLP (fc1/relu/fc2/relu/fc3) -> refined transform
# -----------------------------------------------------------------------------
def _fused_kernel(params_ref, image_ref, w1i_ref, w1p_ref, b1_ref,
                  w2_ref, b2_ref, w3_ref, b3_ref, out_ref):
    p = params_ref[...]                       # (B, 8): phi, theta, psi, off_x, off_y, 0,0,0
    phi, theta, psi = p[:, 0:1], p[:, 1:2], p[:, 2:3]
    off_x, off_y = p[:, 3:4], p[:, 4:5]

    # Initial transform: only its 16 entries, kept in vregs (never hits HBM).
    pose0 = _assemble_lanes(_rot_entries(phi, theta, psi, off_x, off_y), POSE_PAD)

    # PoseInference MLP. fc1 split: image part (K = H*W, 128-aligned MXU matmul)
    # + pose part (K zero-padded 16 -> 128).
    h1 = jnp.dot(image_ref[...], w1i_ref[...], preferred_element_type=jnp.float32)
    h1 = h1 + jnp.dot(pose0, w1p_ref[...], preferred_element_type=jnp.float32)
    h1 = jnp.maximum(h1 + b1_ref[...], 0.0)

    h2 = jnp.dot(h1, w2_ref[...], preferred_element_type=jnp.float32)
    h2 = jnp.maximum(h2 + b2_ref[...], 0.0)

    delta = jnp.dot(h2, w3_ref[...], preferred_element_type=jnp.float32) + b3_ref[...]
    d_phi, d_theta, d_psi = delta[:, 0:1], delta[:, 1:2], delta[:, 2:3]
    d_x, d_y = delta[:, 3:4], delta[:, 4:5]

    # Refined transform, written lane-dense (first 16 of 128 lanes hold the 4x4).
    pose1 = _rot_entries(phi + d_phi, theta + d_theta, psi + d_psi,
                         off_x + d_x, off_y + d_y)
    out_ref[...] = _assemble_lanes(pose1, OUT_PAD)


def _fused_forward(params, image_flat, w1i, w1p, b1, w2, b2, w3, b3):
    b, hw = image_flat.shape
    matmul_flops = 2 * b * (hw * HPAD + POSE_PAD * HPAD + HPAD * HPAD + HPAD * OUT_PAD)
    bytes_accessed = 4 * (params.size + image_flat.size + w1i.size + w1p.size
                          + b1.size + w2.size + b2.size + w3.size + b3.size
                          + b * OUT_PAD)
    return pl.pallas_call(
        _fused_kernel,
        out_shape=jax.ShapeDtypeStruct((b, OUT_PAD), jnp.float32),
        cost_estimate=pl.CostEstimate(
            flops=int(matmul_flops + 200 * b),
            transcendentals=int(12 * b),          # 2 transforms x 6 trig calls
            bytes_accessed=int(bytes_accessed)),
    )(params, image_flat, w1i, w1p, b1, w2, b2, w3, b3)


# -----------------------------------------------------------------------------
# Module-level glue (parameter setup / padding) in plain JAX
# -----------------------------------------------------------------------------
def _init_linear(key, fan_in, fan_out):
    """nn.Linear-style init: U(-1/sqrt(fan_in), 1/sqrt(fan_in)); W stored (in, out)."""
    kw, kb = jax.random.split(key)
    bound = 1.0 / math.sqrt(fan_in)
    w = jax.random.uniform(kw, (fan_in, fan_out), jnp.float32, -bound, bound)
    b = jax.random.uniform(kb, (1, fan_out), jnp.float32, -bound, bound)
    return w, b


class ViewAugmentingAdapterPallas:
    """JAX/Pallas port of ViewAugmentingAdapter (pose inference enabled)."""

    def __init__(self, image_shape, n_output_pose_params=5, num_hidden=32, key=None):
        h, w = image_shape
        assert h == w
        assert num_hidden <= HPAD and n_output_pose_params <= OUT_PAD
        self.image_shape = image_shape
        self.n_output_pose_params = n_output_pose_params
        hw = h * w
        input_dim = hw + N_POSE_FLAT

        key = jax.random.PRNGKey(42) if key is None else key
        k1, k2, k3 = jax.random.split(key, 3)
        w1, b1 = _init_linear(k1, input_dim, num_hidden)
        w2, b2 = _init_linear(k2, num_hidden, num_hidden)
        w3, b3 = _init_linear(k3, num_hidden, n_output_pose_params)
        self.raw_params = (w1, b1, w2, b2, w3, b3)   # for pure-JAX reference

        # Zero-padded, 128-lane-aligned kernel weights (padding is exact math:
        # relu(0) = 0, and padded rows/cols are all zero so they contribute nothing).
        self.w1_img = jnp.zeros((hw, HPAD), jnp.float32).at[:, :num_hidden].set(w1[:hw])
        self.w1_pose = (jnp.zeros((POSE_PAD, HPAD), jnp.float32)
                        .at[:N_POSE_FLAT, :num_hidden].set(w1[hw:]))
        self.b1 = jnp.zeros((1, HPAD), jnp.float32).at[:, :num_hidden].set(b1)
        self.w2 = jnp.zeros((HPAD, HPAD), jnp.float32).at[:num_hidden, :num_hidden].set(w2)
        self.b2 = jnp.zeros((1, HPAD), jnp.float32).at[:, :num_hidden].set(b2)
        self.w3 = (jnp.zeros((HPAD, OUT_PAD), jnp.float32)
                   .at[:num_hidden, :n_output_pose_params].set(w3))
        self.b3 = (jnp.zeros((1, OUT_PAD), jnp.float32)
                   .at[:, :n_output_pose_params].set(b3))

    def forward(self, view_info, image):
        phi = view_info["view_phi"].astype(jnp.float32)
        theta = view_info["view_theta"].astype(jnp.float32)
        psi = view_info["view_psi"].astype(jnp.float32)
        off_x = view_info["offset_x"].astype(jnp.float32)
        off_y = view_info["offset_y"].astype(jnp.float32)

        b = image.shape[0]
        zero = jnp.zeros_like(phi)
        # One packed (B, 8) scalar-parameter input -> single DMA.
        params = jnp.stack([phi, theta, psi, off_x, off_y, zero, zero, zero], axis=-1)
        image_flat = image.reshape(b, -1).astype(jnp.float32)

        out = _fused_forward(params, image_flat, self.w1_img, self.w1_pose, self.b1,
                             self.w2, self.b2, self.w3, self.b3)
        # First 16 lanes hold the row-major refined 4x4 transform matrix.
        # TODO(synk): `self.renderer(transform_matrix, ...)` is an injected external
        #             module (not defined in the spec file); return the refined pose.
        return out[:, :N_POSE_FLAT].reshape(b, 4, 4)


# -----------------------------------------------------------------------------
# Pure-JAX reference (correctness check, unpadded weights)
# -----------------------------------------------------------------------------
def _ref_transform(phi, theta, psi, off_x, off_y):
    d = _DEG2RAD
    c1, s1 = jnp.cos(phi * d), jnp.sin(phi * d)
    c2, s2 = jnp.cos(theta * d), jnp.sin(theta * d)
    c3, s3 = jnp.cos(psi * d), jnp.sin(psi * d)
    r = jnp.stack([
        c1 * c2 * c3 - s1 * s3, -c1 * c2 * s3 - s1 * c3, c1 * s2,
        s1 * c2 * c3 + c1 * s3, -s1 * c2 * s3 + c1 * c3, s1 * s2,
        -s2 * c3, s2 * s3, c2], axis=-1).reshape(-1, 3, 3)
    tx, ty = -off_y, -off_x
    col = (r[:, :, 0] * tx[:, None] + r[:, :, 1] * ty[:, None])[:, :, None]
    top = jnp.concatenate([r, col], axis=-1)
    bottom = jnp.broadcast_to(jnp.array([[[0., 0., 0., 1.]]], jnp.float32),
                              (r.shape[0], 1, 4))
    return jnp.concatenate([top, bottom], axis=1)


def _ref_forward(adapter, view_info, image):
    phi = view_info["view_phi"]
    theta = view_info["view_theta"]
    psi = view_info["view_psi"]
    off_x, off_y = view_info["offset_x"], view_info["offset_y"]
    w1, b1, w2, b2, w3, b3 = adapter.raw_params

    tm = _ref_transform(phi, theta, psi, off_x, off_y)
    b = image.shape[0]
    x = jnp.concatenate([image.reshape(b, -1), tm.reshape(b, N_POSE_FLAT)], axis=-1)
    h1 = jnp.maximum(x @ w1 + b1, 0.0)
    h2 = jnp.maximum(h1 @ w2 + b2, 0.0)
    delta = h2 @ w3 + b3                              # (B, 5)
    d_phi, d_theta, d_psi, d_x, d_y = (delta[:, i] for i in range(5))
    return _ref_transform(phi + d_phi, theta + d_theta, psi + d_psi,
                          off_x + d_x, off_y + d_y)


if __name__ == "__main__":
    B, H, W = 2, 16, 16
    key = jax.random.PRNGKey(0)
    k_img, k_phi, k_th, k_psi, k_x, k_y = jax.random.split(key, 6)

    image = jax.random.normal(k_img, (B, H, W), jnp.float32)
    view_info = {
        "view_phi": jax.random.uniform(k_phi, (B,), jnp.float32, -180.0, 180.0),
        "view_theta": jax.random.uniform(k_th, (B,), jnp.float32, 0.0, 180.0),
        "view_psi": jax.random.uniform(k_psi, (B,), jnp.float32, -180.0, 180.0),
        "offset_x": jax.random.uniform(k_x, (B,), jnp.float32, -5.0, 5.0),
        "offset_y": jax.random.uniform(k_y, (B,), jnp.float32, -5.0, 5.0),
    }

    adapter = ViewAugmentingAdapterPallas(
        image_shape=(H, W), n_output_pose_params=5, num_hidden=32,
        key=jax.random.PRNGKey(1))

    out = adapter.forward(view_info, image)
    out = jax.block_until_ready(out)

    ref = jax.block_until_ready(_ref_forward(adapter, view_info, image))
    assert out.shape == (B, 4, 4)
    assert jnp.allclose(out, ref, rtol=1e-3, atol=1e-3), "mismatch vs JAX reference"

    print("KERNEL_OK")
</pallas_src>

<mosaic_0001>
module attributes {stable_mosaic.version = 11 : i64} {
  func.func @_fused_kernel(%arg0: memref<2x8xf32, #tpu.memory_space<vmem>>, %arg1: memref<2x256xf32, #tpu.memory_space<vmem>>, %arg2: memref<256x128xf32, #tpu.memory_space<vmem>>, %arg3: memref<128x128xf32, #tpu.memory_space<vmem>>, %arg4: memref<1x128xf32, #tpu.memory_space<vmem>>, %arg5: memref<128x128xf32, #tpu.memory_space<vmem>>, %arg6: memref<1x128xf32, #tpu.memory_space<vmem>>, %arg7: memref<128x128xf32, #tpu.memory_space<vmem>>, %arg8: memref<1x128xf32, #tpu.memory_space<vmem>>, %arg9: memref<2x128xf32, #tpu.memory_space<vmem>>) attributes {dimension_semantics = [], scalar_prefetch = 0 : i64, scratch_operands = 0 : i64, tpu.core_type = #tpu.core_type<tc>} {
    %c0 = arith.constant 0 : index
    %c0_0 = arith.constant 0 : index
    %0 = vector.load %arg0[%c0, %c0_0] : memref<2x8xf32, #tpu.memory_space<vmem>>, vector<2x8xf32>
    %1 = vector.extract_strided_slice %0 {offsets = [0, 0], sizes = [2, 1], strides = [1, 1]} : vector<2x8xf32> to vector<2x1xf32>
    %2 = vector.extract_strided_slice %0 {offsets = [0, 1], sizes = [2, 1], strides = [1, 1]} : vector<2x8xf32> to vector<2x1xf32>
    %3 = vector.extract_strided_slice %0 {offsets = [0, 2], sizes = [2, 1], strides = [1, 1]} : vector<2x8xf32> to vector<2x1xf32>
    %4 = vector.extract_strided_slice %0 {offsets = [0, 3], sizes = [2, 1], strides = [1, 1]} : vector<2x8xf32> to vector<2x1xf32>
    %5 = vector.extract_strided_slice %0 {offsets = [0, 4], sizes = [2, 1], strides = [1, 1]} : vector<2x8xf32> to vector<2x1xf32>
    %cst = arith.constant 0.0174532924 : f32
    %6 = vector.broadcast %cst : f32 to vector<2x1xf32>
    %7 = arith.mulf %1, %6 : vector<2x1xf32>
    %cst_1 = arith.constant 0.0174532924 : f32
    %8 = vector.broadcast %cst_1 : f32 to vector<2x1xf32>
    %9 = arith.mulf %2, %8 : vector<2x1xf32>
    %cst_2 = arith.constant 0.0174532924 : f32
    %10 = vector.broadcast %cst_2 : f32 to vector<2x1xf32>
    %11 = arith.mulf %3, %10 : vector<2x1xf32>
    %12 = math.cos %7 : vector<2x1xf32>
    %13 = math.sin %7 : vector<2x1xf32>
    %14 = math.cos %9 : vector<2x1xf32>
    %15 = math.sin %9 : vector<2x1xf32>
    %16 = math.cos %11 : vector<2x1xf32>
    %17 = math.sin %11 : vector<2x1xf32>
    %18 = arith.mulf %12, %14 : vector<2x1xf32>
    %19 = arith.mulf %18, %16 : vector<2x1xf32>
    %20 = arith.mulf %13, %17 : vector<2x1xf32>
    %21 = arith.subf %19, %20 : vector<2x1xf32>
    %cst_3 = arith.constant 0.000000e+00 : f32
    %22 = vector.broadcast %cst_3 : f32 to vector<2x1xf32>
    %23 = arith.subf %22, %12 : vector<2x1xf32>
    %24 = arith.mulf %23, %14 : vector<2x1xf32>
    %25 = arith.mulf %24, %17 : vector<2x1xf32>
    %26 = arith.mulf %13, %16 : vector<2x1xf32>
    %27 = arith.subf %25, %26 : vector<2x1xf32>
    %28 = arith.mulf %12, %15 : vector<2x1xf32>
    %29 = arith.mulf %13, %14 : vector<2x1xf32>
    %30 = arith.mulf %29, %16 : vector<2x1xf32>
    %31 = arith.mulf %12, %17 : vector<2x1xf32>
    %32 = arith.addf %30, %31 : vector<2x1xf32>
    %cst_4 = arith.constant 0.000000e+00 : f32
    %33 = vector.broadcast %cst_4 : f32 to vector<2x1xf32>
    %34 = arith.subf %33, %13 : vector<2x1xf32>
    %35 = arith.mulf %34, %14 : vector<2x1xf32>
    %36 = arith.mulf %35, %17 : vector<2x1xf32>
    %37 = arith.mulf %12, %16 : vector<2x1xf32>
    %38 = arith.addf %36, %37 : vector<2x1xf32>
    %39 = arith.mulf %13, %15 : vector<2x1xf32>
    %cst_5 = arith.constant 0.000000e+00 : f32
    %40 = vector.broadcast %cst_5 : f32 to vector<2x1xf32>
    %41 = arith.subf %40, %15 : vector<2x1xf32>
    %42 = arith.mulf %41, %16 : vector<2x1xf32>
    %43 = arith.mulf %15, %17 : vector<2x1xf32>
    %cst_6 = arith.constant 0.000000e+00 : f32
    %44 = vector.broadcast %cst_6 : f32 to vector<2x1xf32>
    %45 = arith.subf %44, %5 : vector<2x1xf32>
    %cst_7 = arith.constant 0.000000e+00 : f32
    %46 = vector.broadcast %cst_7 : f32 to vector<2x1xf32>
    %47 = arith.subf %46, %4 : vector<2x1xf32>
    %48 = arith.mulf %21, %45 : vector<2x1xf32>
    %49 = arith.mulf %27, %47 : vector<2x1xf32>
    %50 = arith.addf %48, %49 : vector<2x1xf32>
    %51 = arith.mulf %32, %45 : vector<2x1xf32>
    %52 = arith.mulf %38, %47 : vector<2x1xf32>
    %53 = arith.addf %51, %52 : vector<2x1xf32>
    %54 = arith.mulf %42, %45 : vector<2x1xf32>
    %55 = arith.mulf %43, %47 : vector<2x1xf32>
    %56 = arith.addf %54, %55 : vector<2x1xf32>
    %cst_8 = arith.constant 0.000000e+00 : f32
    %57 = vector.broadcast %cst_8 : f32 to vector<2x1xf32>
    %cst_9 = arith.constant 1.000000e+00 : f32
    %58 = vector.broadcast %cst_9 : f32 to vector<2x1xf32>
    %59 = tpu.iota {dimensions = array<i32: 1>} : vector<1x128xi32>
    %cst_10 = arith.constant 0.000000e+00 : f32
    %60 = vector.broadcast %cst_10 : f32 to vector<2x128xf32>
    %c0_i32 = arith.constant 0 : i32
    %61 = vector.broadcast %c0_i32 : i32 to vector<1x128xi32>
    %62 = arith.cmpi eq, %59, %61 : vector<1x128xi32>
    %cst_11 = arith.constant 0.000000e+00 : f32
    %63 = vector.shape_cast %62 : vector<1x128xi1> to vector<1x128xi1>
    %64 = vector.broadcast %63 : vector<1x128xi1> to vector<2x128xi1>
    %65 = vector.shape_cast %21 : vector<2x1xf32> to vector<2x1xf32>
    %66 = vector.broadcast %65 : vector<2x1xf32> to vector<2x128xf32>
    %67 = vector.broadcast %cst_11 : f32 to vector<2x128xf32>
    %68 = arith.select %64, %66, %67 : vector<2x128xi1>, vector<2x128xf32>
    %69 = arith.addf %60, %68 : vector<2x128xf32>
    %c1_i32 = arith.constant 1 : i32
    %70 = vector.broadcast %c1_i32 : i32 to vector<1x128xi32>
    %71 = arith.cmpi eq, %59, %70 : vector<1x128xi32>
    %cst_12 = arith.constant 0.000000e+00 : f32
    %72 = vector.shape_cast %71 : vector<1x128xi1> to vector<1x128xi1>
    %73 = vector.broadcast %72 : vector<1x128xi1> to vector<2x128xi1>
    %74 = vector.shape_cast %27 : vector<2x1xf32> to vector<2x1xf32>
    %75 = vector.broadcast %74 : vector<2x1xf32> to vector<2x128xf32>
    %76 = vector.broadcast %cst_12 : f32 to vector<2x128xf32>
    %77 = arith.select %73, %75, %76 : vector<2x128xi1>, vector<2x128xf32>
    %78 = arith.addf %69, %77 : vector<2x128xf32>
    %c2_i32 = arith.constant 2 : i32
    %79 = vector.broadcast %c2_i32 : i32 to vector<1x128xi32>
    %80 = arith.cmpi eq, %59, %79 : vector<1x128xi32>
    %cst_13 = arith.constant 0.000000e+00 : f32
    %81 = vector.shape_cast %80 : vector<1x128xi1> to vector<1x128xi1>
    %82 = vector.broadcast %81 : vector<1x128xi1> to vector<2x128xi1>
    %83 = vector.shape_cast %28 : vector<2x1xf32> to vector<2x1xf32>
    %84 = vector.broadcast %83 : vector<2x1xf32> to vector<2x128xf32>
    %85 = vector.broadcast %cst_13 : f32 to vector<2x128xf32>
    %86 = arith.select %82, %84, %85 : vector<2x128xi1>, vector<2x128xf32>
    %87 = arith.addf %78, %86 : vector<2x128xf32>
    %c3_i32 = arith.constant 3 : i32
    %88 = vector.broadcast %c3_i32 : i32 to vector<1x128xi32>
    %89 = arith.cmpi eq, %59, %88 : vector<1x128xi32>
    %cst_14 = arith.constant 0.000000e+00 : f32
    %90 = vector.shape_cast %89 : vector<1x128xi1> to vector<1x128xi1>
    %91 = vector.broadcast %90 : vector<1x128xi1> to vector<2x128xi1>
    %92 = vector.shape_cast %50 : vector<2x1xf32> to vector<2x1xf32>
    %93 = vector.broadcast %92 : vector<2x1xf32> to vector<2x128xf32>
    %94 = vector.broadcast %cst_14 : f32 to vector<2x128xf32>
    %95 = arith.select %91, %93, %94 : vector<2x128xi1>, vector<2x128xf32>
    %96 = arith.addf %87, %95 : vector<2x128xf32>
    %c4_i32 = arith.constant 4 : i32
    %97 = vector.broadcast %c4_i32 : i32 to vector<1x128xi32>
    %98 = arith.cmpi eq, %59, %97 : vector<1x128xi32>
    %cst_15 = arith.constant 0.000000e+00 : f32
    %99 = vector.shape_cast %98 : vector<1x128xi1> to vector<1x128xi1>
    %100 = vector.broadcast %99 : vector<1x128xi1> to vector<2x128xi1>
    %101 = vector.shape_cast %32 : vector<2x1xf32> to vector<2x1xf32>
    %102 = vector.broadcast %101 : vector<2x1xf32> to vector<2x128xf32>
    %103 = vector.broadcast %cst_15 : f32 to vector<2x128xf32>
    %104 = arith.select %100, %102, %103 : vector<2x128xi1>, vector<2x128xf32>
    %105 = arith.addf %96, %104 : vector<2x128xf32>
    %c5_i32 = arith.constant 5 : i32
    %106 = vector.broadcast %c5_i32 : i32 to vector<1x128xi32>
    %107 = arith.cmpi eq, %59, %106 : vector<1x128xi32>
    %cst_16 = arith.constant 0.000000e+00 : f32
    %108 = vector.shape_cast %107 : vector<1x128xi1> to vector<1x128xi1>
    %109 = vector.broadcast %108 : vector<1x128xi1> to vector<2x128xi1>
    %110 = vector.shape_cast %38 : vector<2x1xf32> to vector<2x1xf32>
    %111 = vector.broadcast %110 : vector<2x1xf32> to vector<2x128xf32>
    %112 = vector.broadcast %cst_16 : f32 to vector<2x128xf32>
    %113 = arith.select %109, %111, %112 : vector<2x128xi1>, vector<2x128xf32>
    %114 = arith.addf %105, %113 : vector<2x128xf32>
    %c6_i32 = arith.constant 6 : i32
    %115 = vector.broadcast %c6_i32 : i32 to vector<1x128xi32>
    %116 = arith.cmpi eq, %59, %115 : vector<1x128xi32>
    %cst_17 = arith.constant 0.000000e+00 : f32
    %117 = vector.shape_cast %116 : vector<1x128xi1> to vector<1x128xi1>
    %118 = vector.broadcast %117 : vector<1x128xi1> to vector<2x128xi1>
    %119 = vector.shape_cast %39 : vector<2x1xf32> to vector<2x1xf32>
    %120 = vector.broadcast %119 : vector<2x1xf32> to vector<2x128xf32>
    %121 = vector.broadcast %cst_17 : f32 to vector<2x128xf32>
    %122 = arith.select %118, %120, %121 : vector<2x128xi1>, vector<2x128xf32>
    %123 = arith.addf %114, %122 : vector<2x128xf32>
    %c7_i32 = arith.constant 7 : i32
    %124 = vector.broadcast %c7_i32 : i32 to vector<1x128xi32>
    %125 = arith.cmpi eq, %59, %124 : vector<1x128xi32>
    %cst_18 = arith.constant 0.000000e+00 : f32
    %126 = vector.shape_cast %125 : vector<1x128xi1> to vector<1x128xi1>
    %127 = vector.broadcast %126 : vector<1x128xi1> to vector<2x128xi1>
    %128 = vector.shape_cast %53 : vector<2x1xf32> to vector<2x1xf32>
    %129 = vector.broadcast %128 : vector<2x1xf32> to vector<2x128xf32>
    %130 = vector.broadcast %cst_18 : f32 to vector<2x128xf32>
    %131 = arith.select %127, %129, %130 : vector<2x128xi1>, vector<2x128xf32>
    %132 = arith.addf %123, %131 : vector<2x128xf32>
    %c8_i32 = arith.constant 8 : i32
    %133 = vector.broadcast %c8_i32 : i32 to vector<1x128xi32>
    %134 = arith.cmpi eq, %59, %133 : vector<1x128xi32>
    %cst_19 = arith.constant 0.000000e+00 : f32
    %135 = vector.shape_cast %134 : vector<1x128xi1> to vector<1x128xi1>
    %136 = vector.broadcast %135 : vector<1x128xi1> to vector<2x128xi1>
    %137 = vector.shape_cast %42 : vector<2x1xf32> to vector<2x1xf32>
    %138 = vector.broadcast %137 : vector<2x1xf32> to vector<2x128xf32>
    %139 = vector.broadcast %cst_19 : f32 to vector<2x128xf32>
    %140 = arith.select %136, %138, %139 : vector<2x128xi1>, vector<2x128xf32>
    %141 = arith.addf %132, %140 : vector<2x128xf32>
    %c9_i32 = arith.constant 9 : i32
    %142 = vector.broadcast %c9_i32 : i32 to vector<1x128xi32>
    %143 = arith.cmpi eq, %59, %142 : vector<1x128xi32>
    %cst_20 = arith.constant 0.000000e+00 : f32
    %144 = vector.shape_cast %143 : vector<1x128xi1> to vector<1x128xi1>
    %145 = vector.broadcast %144 : vector<1x128xi1> to vector<2x128xi1>
    %146 = vector.shape_cast %43 : vector<2x1xf32> to vector<2x1xf32>
    %147 = vector.broadcast %146 : vector<2x1xf32> to vector<2x128xf32>
    %148 = vector.broadcast %cst_20 : f32 to vector<2x128xf32>
    %149 = arith.select %145, %147, %148 : vector<2x128xi1>, vector<2x128xf32>
    %150 = arith.addf %141, %149 : vector<2x128xf32>
    %c10_i32 = arith.constant 10 : i32
    %151 = vector.broadcast %c10_i32 : i32 to vector<1x128xi32>
    %152 = arith.cmpi eq, %59, %151 : vector<1x128xi32>
    %cst_21 = arith.constant 0.000000e+00 : f32
    %153 = vector.shape_cast %152 : vector<1x128xi1> to vector<1x128xi1>
    %154 = vector.broadcast %153 : vector<1x128xi1> to vector<2x128xi1>
    %155 = vector.shape_cast %14 : vector<2x1xf32> to vector<2x1xf32>
    %156 = vector.broadcast %155 : vector<2x1xf32> to vector<2x128xf32>
    %157 = vector.broadcast %cst_21 : f32 to vector<2x128xf32>
    %158 = arith.select %154, %156, %157 : vector<2x128xi1>, vector<2x128xf32>
    %159 = arith.addf %150, %158 : vector<2x128xf32>
    %c11_i32 = arith.constant 11 : i32
    %160 = vector.broadcast %c11_i32 : i32 to vector<1x128xi32>
    %161 = arith.cmpi eq, %59, %160 : vector<1x128xi32>
    %cst_22 = arith.constant 0.000000e+00 : f32
    %162 = vector.shape_cast %161 : vector<1x128xi1> to vector<1x128xi1>
    %163 = vector.broadcast %162 : vector<1x128xi1> to vector<2x128xi1>
    %164 = vector.shape_cast %56 : vector<2x1xf32> to vector<2x1xf32>
    %165 = vector.broadcast %164 : vector<2x1xf32> to vector<2x128xf32>
    %166 = vector.broadcast %cst_22 : f32 to vector<2x128xf32>
    %167 = arith.select %163, %165, %166 : vector<2x128xi1>, vector<2x128xf32>
    %168 = arith.addf %159, %167 : vector<2x128xf32>
    %c12_i32 = arith.constant 12 : i32
    %169 = vector.broadcast %c12_i32 : i32 to vector<1x128xi32>
    %170 = arith.cmpi eq, %59, %169 : vector<1x128xi32>
    %cst_23 = arith.constant 0.000000e+00 : f32
    %171 = vector.shape_cast %170 : vector<1x128xi1> to vector<1x128xi1>
    %172 = vector.broadcast %171 : vector<1x128xi1> to vector<2x128xi1>
    %173 = vector.shape_cast %57 : vector<2x1xf32> to vector<2x1xf32>
    %174 = vector.broadcast %173 : vector<2x1xf32> to vector<2x128xf32>
    %175 = vector.broadcast %cst_23 : f32 to vector<2x128xf32>
    %176 = arith.select %172, %174, %175 : vector<2x128xi1>, vector<2x128xf32>
    %177 = arith.addf %168, %176 : vector<2x128xf32>
    %c13_i32 = arith.constant 13 : i32
    %178 = vector.broadcast %c13_i32 : i32 to vector<1x128xi32>
    %179 = arith.cmpi eq, %59, %178 : vector<1x128xi32>
    %cst_24 = arith.constant 0.000000e+00 : f32
    %180 = vector.shape_cast %179 : vector<1x128xi1> to vector<1x128xi1>
    %181 = vector.broadcast %180 : vector<1x128xi1> to vector<2x128xi1>
    %182 = vector.shape_cast %57 : vector<2x1xf32> to vector<2x1xf32>
    %183 = vector.broadcast %182 : vector<2x1xf32> to vector<2x128xf32>
    %184 = vector.broadcast %cst_24 : f32 to vector<2x128xf32>
    %185 = arith.select %181, %183, %184 : vector<2x128xi1>, vector<2x128xf32>
    %186 = arith.addf %177, %185 : vector<2x128xf32>
    %c14_i32 = arith.constant 14 : i32
    %187 = vector.broadcast %c14_i32 : i32 to vector<1x128xi32>
    %188 = arith.cmpi eq, %59, %187 : vector<1x128xi32>
    %cst_25 = arith.constant 0.000000e+00 : f32
    %189 = vector.shape_cast %188 : vector<1x128xi1> to vector<1x128xi1>
    %190 = vector.broadcast %189 : vector<1x128xi1> to vector<2x128xi1>
    %191 = vector.shape_cast %57 : vector<2x1xf32> to vector<2x1xf32>
    %192 = vector.broadcast %191 : vector<2x1xf32> to vector<2x128xf32>
    %193 = vector.broadcast %cst_25 : f32 to vector<2x128xf32>
    %194 = arith.select %190, %192, %193 : vector<2x128xi1>, vector<2x128xf32>
    %195 = arith.addf %186, %194 : vector<2x128xf32>
    %c15_i32 = arith.constant 15 : i32
    %196 = vector.broadcast %c15_i32 : i32 to vector<1x128xi32>
    %197 = arith.cmpi eq, %59, %196 : vector<1x128xi32>
    %cst_26 = arith.constant 0.000000e+00 : f32
    %198 = vector.shape_cast %197 : vector<1x128xi1> to vector<1x128xi1>
    %199 = vector.broadcast %198 : vector<1x128xi1> to vector<2x128xi1>
    %200 = vector.shape_cast %58 : vector<2x1xf32> to vector<2x1xf32>
    %201 = vector.broadcast %200 : vector<2x1xf32> to vector<2x128xf32>
    %202 = vector.broadcast %cst_26 : f32 to vector<2x128xf32>
    %203 = arith.select %199, %201, %202 : vector<2x128xi1>, vector<2x128xf32>
    %204 = arith.addf %195, %203 : vector<2x128xf32>
    %c0_27 = arith.constant 0 : index
    %c0_28 = arith.constant 0 : index
    %205 = vector.load %arg1[%c0_27, %c0_28] : memref<2x256xf32, #tpu.memory_space<vmem>>, vector<2x256xf32>
    %c0_29 = arith.constant 0 : index
    %c0_30 = arith.constant 0 : index
    %206 = vector.load %arg2[%c0_29, %c0_30] : memref<256x128xf32, #tpu.memory_space<vmem>>, vector<256x128xf32>
    %cst_31 = arith.constant dense<0.000000e+00> : vector<2x128xf32>
    %207 = tpu.matmul %205, %206, %cst_31 {dimension_numbers = #tpu.dot_dimension_numbers<[1], [0], [0], [1], [0, 0, 1, 1], [], []>} : vector<2x256xf32>, vector<256x128xf32>, vector<2x128xf32> -> vector<2x128xf32>
    %c0_32 = arith.constant 0 : index
    %c0_33 = arith.constant 0 : index
    %208 = vector.load %arg3[%c0_32, %c0_33] : memref<128x128xf32, #tpu.memory_space<vmem>>, vector<128x128xf32>
    %cst_34 = arith.constant dense<0.000000e+00> : vector<2x128xf32>
    %209 = tpu.matmul %204, %208, %cst_34 {dimension_numbers = #tpu.dot_dimension_numbers<[1], [0], [0], [1], [0, 0, 1, 1], [], []>} : vector<2x128xf32>, vector<128x128xf32>, vector<2x128xf32> -> vector<2x128xf32>
    %210 = arith.addf %207, %209 : vector<2x128xf32>
    %c0_35 = arith.constant 0 : index
    %c0_36 = arith.constant 0 : index
    %211 = vector.load %arg4[%c0_35, %c0_36] : memref<1x128xf32, #tpu.memory_space<vmem>>, vector<1x128xf32>
    %212 = vector.broadcast %211 : vector<1x128xf32> to vector<2x128xf32>
    %213 = arith.addf %210, %212 : vector<2x128xf32>
    %cst_37 = arith.constant 0.000000e+00 : f32
    %214 = vector.broadcast %cst_37 : f32 to vector<2x128xf32>
    %215 = arith.maximumf %213, %214 : vector<2x128xf32>
    %c0_38 = arith.constant 0 : index
    %c0_39 = arith.constant 0 : index
    %216 = vector.load %arg5[%c0_38, %c0_39] : memref<128x128xf32, #tpu.memory_space<vmem>>, vector<128x128xf32>
    %cst_40 = arith.constant dense<0.000000e+00> : vector<2x128xf32>
    %217 = tpu.matmul %215, %216, %cst_40 {dimension_numbers = #tpu.dot_dimension_numbers<[1], [0], [0], [1], [0, 0, 1, 1], [], []>} : vector<2x128xf32>, vector<128x128xf32>, vector<2x128xf32> -> vector<2x128xf32>
    %c0_41 = arith.constant 0 : index
    %c0_42 = arith.constant 0 : index
    %218 = vector.load %arg6[%c0_41, %c0_42] : memref<1x128xf32, #tpu.memory_space<vmem>>, vector<1x128xf32>
    %219 = vector.broadcast %218 : vector<1x128xf32> to vector<2x128xf32>
    %220 = arith.addf %217, %219 : vector<2x128xf32>
    %cst_43 = arith.constant 0.000000e+00 : f32
    %221 = vector.broadcast %cst_43 : f32 to vector<2x128xf32>
    %222 = arith.maximumf %220, %221 : vector<2x128xf32>
    %c0_44 = arith.constant 0 : index
    %c0_45 = arith.constant 0 : index
    %223 = vector.load %arg7[%c0_44, %c0_45] : memref<128x128xf32, #tpu.memory_space<vmem>>, vector<128x128xf32>
    %cst_46 = arith.constant dense<0.000000e+00> : vector<2x128xf32>
    %224 = tpu.matmul %222, %223, %cst_46 {dimension_numbers = #tpu.dot_dimension_numbers<[1], [0], [0], [1], [0, 0, 1, 1], [], []>} : vector<2x128xf32>, vector<128x128xf32>, vector<2x128xf32> -> vector<2x128xf32>
    %c0_47 = arith.constant 0 : index
    %c0_48 = arith.constant 0 : index
    %225 = vector.load %arg8[%c0_47, %c0_48] : memref<1x128xf32, #tpu.memory_space<vmem>>, vector<1x128xf32>
    %226 = vector.broadcast %225 : vector<1x128xf32> to vector<2x128xf32>
    %227 = arith.addf %224, %226 : vector<2x128xf32>
    %228 = vector.extract_strided_slice %227 {offsets = [0, 0], sizes = [2, 1], strides = [1, 1]} : vector<2x128xf32> to vector<2x1xf32>
    %229 = vector.extract_strided_slice %227 {offsets = [0, 1], sizes = [2, 1], strides = [1, 1]} : vector<2x128xf32> to vector<2x1xf32>
    %230 = vector.extract_strided_slice %227 {offsets = [0, 2], sizes = [2, 1], strides = [1, 1]} : vector<2x128xf32> to vector<2x1xf32>
    %231 = vector.extract_strided_slice %227 {offsets = [0, 3], sizes = [2, 1], strides = [1, 1]} : vector<2x128xf32> to vector<2x1xf32>
    %232 = vector.extract_strided_slice %227 {offsets = [0, 4], sizes = [2, 1], strides = [1, 1]} : vector<2x128xf32> to vector<2x1xf32>
    %233 = arith.addf %1, %228 : vector<2x1xf32>
    %234 = arith.addf %2, %229 : vector<2x1xf32>
    %235 = arith.addf %3, %230 : vector<2x1xf32>
    %236 = arith.addf %4, %231 : vector<2x1xf32>
    %237 = arith.addf %5, %232 : vector<2x1xf32>
    %cst_49 = arith.constant 0.0174532924 : f32
    %238 = vector.broadcast %cst_49 : f32 to vector<2x1xf32>
    %239 = arith.mulf %233, %238 : vector<2x1xf32>
    %cst_50 = arith.constant 0.0174532924 : f32
    %240 = vector.broadcast %cst_50 : f32 to vector<2x1xf32>
    %241 = arith.mulf %234, %240 : vector<2x1xf32>
    %cst_51 = arith.constant 0.0174532924 : f32
    %242 = vector.broadcast %cst_51 : f32 to vector<2x1xf32>
    %243 = arith.mulf %235, %242 : vector<2x1xf32>
    %244 = math.cos %239 : vector<2x1xf32>
    %245 = math.sin %239 : vector<2x1xf32>
    %246 = math.cos %241 : vector<2x1xf32>
    %247 = math.sin %241 : vector<2x1xf32>
    %248 = math.cos %243 : vector<2x1xf32>
    %249 = math.sin %243 : vector<2x1xf32>
    %250 = arith.mulf %244, %246 : vector<2x1xf32>
    %251 = arith.mulf %250, %248 : vector<2x1xf32>
    %252 = arith.mulf %245, %249 : vector<2x1xf32>
    %253 = arith.subf %251, %252 : vector<2x1xf32>
    %cst_52 = arith.constant 0.000000e+00 : f32
    %254 = vector.broadcast %cst_52 : f32 to vector<2x1xf32>
    %255 = arith.subf %254, %244 : vector<2x1xf32>
    %256 = arith.mulf %255, %246 : vector<2x1xf32>
    %257 = arith.mulf %256, %249 : vector<2x1xf32>
    %258 = arith.mulf %245, %248 : vector<2x1xf32>
    %259 = arith.subf %257, %258 : vector<2x1xf32>
    %260 = arith.mulf %244, %247 : vector<2x1xf32>
    %261 = arith.mulf %245, %246 : vector<2x1xf32>
    %262 = arith.mulf %261, %248 : vector<2x1xf32>
    %263 = arith.mulf %244, %249 : vector<2x1xf32>
    %264 = arith.addf %262, %263 : vector<2x1xf32>
    %cst_53 = arith.constant 0.000000e+00 : f32
    %265 = vector.broadcast %cst_53 : f32 to vector<2x1xf32>
    %266 = arith.subf %265, %245 : vector<2x1xf32>
    %267 = arith.mulf %266, %246 : vector<2x1xf32>
    %268 = arith.mulf %267, %249 : vector<2x1xf32>
    %269 = arith.mulf %244, %248 : vector<2x1xf32>
    %270 = arith.addf %268, %269 : vector<2x1xf32>
    %271 = arith.mulf %245, %247 : vector<2x1xf32>
    %cst_54 = arith.constant 0.000000e+00 : f32
    %272 = vector.broadcast %cst_54 : f32 to vector<2x1xf32>
    %273 = arith.subf %272, %247 : vector<2x1xf32>
    %274 = arith.mulf %273, %248 : vector<2x1xf32>
    %275 = arith.mulf %247, %249 : vector<2x1xf32>
    %cst_55 = arith.constant 0.000000e+00 : f32
    %276 = vector.broadcast %cst_55 : f32 to vector<2x1xf32>
    %277 = arith.subf %276, %237 : vector<2x1xf32>
    %cst_56 = arith.constant 0.000000e+00 : f32
    %278 = vector.broadcast %cst_56 : f32 to vector<2x1xf32>
    %279 = arith.subf %278, %236 : vector<2x1xf32>
    %280 = arith.mulf %253, %277 : vector<2x1xf32>
    %281 = arith.mulf %259, %279 : vector<2x1xf32>
    %282 = arith.addf %280, %281 : vector<2x1xf32>
    %283 = arith.mulf %264, %277 : vector<2x1xf32>
    %284 = arith.mulf %270, %279 : vector<2x1xf32>
    %285 = arith.addf %283, %284 : vector<2x1xf32>
    %286 = arith.mulf %274, %277 : vector<2x1xf32>
    %287 = arith.mulf %275, %279 : vector<2x1xf32>
    %288 = arith.addf %286, %287 : vector<2x1xf32>
    %cst_57 = arith.constant 0.000000e+00 : f32
    %289 = vector.broadcast %cst_57 : f32 to vector<2x1xf32>
    %cst_58 = arith.constant 1.000000e+00 : f32
    %290 = vector.broadcast %cst_58 : f32 to vector<2x1xf32>
    %291 = tpu.iota {dimensions = array<i32: 1>} : vector<1x128xi32>
    %cst_59 = arith.constant 0.000000e+00 : f32
    %292 = vector.broadcast %cst_59 : f32 to vector<2x128xf32>
    %c0_i32_60 = arith.constant 0 : i32
    %293 = vector.broadcast %c0_i32_60 : i32 to vector<1x128xi32>
    %294 = arith.cmpi eq, %291, %293 : vector<1x128xi32>
    %cst_61 = arith.constant 0.000000e+00 : f32
    %295 = vector.shape_cast %294 : vector<1x128xi1> to vector<1x128xi1>
    %296 = vector.broadcast %295 : vector<1x128xi1> to vector<2x128xi1>
    %297 = vector.shape_cast %253 : vector<2x1xf32> to vector<2x1xf32>
    %298 = vector.broadcast %297 : vector<2x1xf32> to vector<2x128xf32>
    %299 = vector.broadcast %cst_61 : f32 to vector<2x128xf32>
    %300 = arith.select %296, %298, %299 : vector<2x128xi1>, vector<2x128xf32>
    %301 = arith.addf %292, %300 : vector<2x128xf32>
    %c1_i32_62 = arith.constant 1 : i32
    %302 = vector.broadcast %c1_i32_62 : i32 to vector<1x128xi32>
    %303 = arith.cmpi eq, %291, %302 : vector<1x128xi32>
    %cst_63 = arith.constant 0.000000e+00 : f32
    %304 = vector.shape_cast %303 : vector<1x128xi1> to vector<1x128xi1>
    %305 = vector.broadcast %304 : vector<1x128xi1> to vector<2x128xi1>
    %306 = vector.shape_cast %259 : vector<2x1xf32> to vector<2x1xf32>
    %307 = vector.broadcast %306 : vector<2x1xf32> to vector<2x128xf32>
    %308 = vector.broadcast %cst_63 : f32 to vector<2x128xf32>
    %309 = arith.select %305, %307, %308 : vector<2x128xi1>, vector<2x128xf32>
    %310 = arith.addf %301, %309 : vector<2x128xf32>
    %c2_i32_64 = arith.constant 2 : i32
    %311 = vector.broadcast %c2_i32_64 : i32 to vector<1x128xi32>
    %312 = arith.cmpi eq, %291, %311 : vector<1x128xi32>
    %cst_65 = arith.constant 0.000000e+00 : f32
    %313 = vector.shape_cast %312 : vector<1x128xi1> to vector<1x128xi1>
    %314 = vector.broadcast %313 : vector<1x128xi1> to vector<2x128xi1>
    %315 = vector.shape_cast %260 : vector<2x1xf32> to vector<2x1xf32>
    %316 = vector.broadcast %315 : vector<2x1xf32> to vector<2x128xf32>
    %317 = vector.broadcast %cst_65 : f32 to vector<2x128xf32>
    %318 = arith.select %314, %316, %317 : vector<2x128xi1>, vector<2x128xf32>
    %319 = arith.addf %310, %318 : vector<2x128xf32>
    %c3_i32_66 = arith.constant 3 : i32
    %320 = vector.broadcast %c3_i32_66 : i32 to vector<1x128xi32>
    %321 = arith.cmpi eq, %291, %320 : vector<1x128xi32>
    %cst_67 = arith.constant 0.000000e+00 : f32
    %322 = vector.shape_cast %321 : vector<1x128xi1> to vector<1x128xi1>
    %323 = vector.broadcast %322 : vector<1x128xi1> to vector<2x128xi1>
    %324 = vector.shape_cast %282 : vector<2x1xf32> to vector<2x1xf32>
    %325 = vector.broadcast %324 : vector<2x1xf32> to vector<2x128xf32>
    %326 = vector.broadcast %cst_67 : f32 to vector<2x128xf32>
    %327 = arith.select %323, %325, %326 : vector<2x128xi1>, vector<2x128xf32>
    %328 = arith.addf %319, %327 : vector<2x128xf32>
    %c4_i32_68 = arith.constant 4 : i32
    %329 = vector.broadcast %c4_i32_68 : i32 to vector<1x128xi32>
    %330 = arith.cmpi eq, %291, %329 : vector<1x128xi32>
    %cst_69 = arith.constant 0.000000e+00 : f32
    %331 = vector.shape_cast %330 : vector<1x128xi1> to vector<1x128xi1>
    %332 = vector.broadcast %331 : vector<1x128xi1> to vector<2x128xi1>
    %333 = vector.shape_cast %264 : vector<2x1xf32> to vector<2x1xf32>
    %334 = vector.broadcast %333 : vector<2x1xf32> to vector<2x128xf32>
    %335 = vector.broadcast %cst_69 : f32 to vector<2x128xf32>
    %336 = arith.select %332, %334, %335 : vector<2x128xi1>, vector<2x128xf32>
    %337 = arith.addf %328, %336 : vector<2x128xf32>
    %c5_i32_70 = arith.constant 5 : i32
    %338 = vector.broadcast %c5_i32_70 : i32 to vector<1x128xi32>
    %339 = arith.cmpi eq, %291, %338 : vector<1x128xi32>
    %cst_71 = arith.constant 0.000000e+00 : f32
    %340 = vector.shape_cast %339 : vector<1x128xi1> to vector<1x128xi1>
    %341 = vector.broadcast %340 : vector<1x128xi1> to vector<2x128xi1>
    %342 = vector.shape_cast %270 : vector<2x1xf32> to vector<2x1xf32>
    %343 = vector.broadcast %342 : vector<2x1xf32> to vector<2x128xf32>
    %344 = vector.broadcast %cst_71 : f32 to vector<2x128xf32>
    %345 = arith.select %341, %343, %344 : vector<2x128xi1>, vector<2x128xf32>
    %346 = arith.addf %337, %345 : vector<2x128xf32>
    %c6_i32_72 = arith.constant 6 : i32
    %347 = vector.broadcast %c6_i32_72 : i32 to vector<1x128xi32>
    %348 = arith.cmpi eq, %291, %347 : vector<1x128xi32>
    %cst_73 = arith.constant 0.000000e+00 : f32
    %349 = vector.shape_cast %348 : vector<1x128xi1> to vector<1x128xi1>
    %350 = vector.broadcast %349 : vector<1x128xi1> to vector<2x128xi1>
    %351 = vector.shape_cast %271 : vector<2x1xf32> to vector<2x1xf32>
    %352 = vector.broadcast %351 : vector<2x1xf32> to vector<2x128xf32>
    %353 = vector.broadcast %cst_73 : f32 to vector<2x128xf32>
    %354 = arith.select %350, %352, %353 : vector<2x128xi1>, vector<2x128xf32>
    %355 = arith.addf %346, %354 : vector<2x128xf32>
    %c7_i32_74 = arith.constant 7 : i32
    %356 = vector.broadcast %c7_i32_74 : i32 to vector<1x128xi32>
    %357 = arith.cmpi eq, %291, %356 : vector<1x128xi32>
    %cst_75 = arith.constant 0.000000e+00 : f32
    %358 = vector.shape_cast %357 : vector<1x128xi1> to vector<1x128xi1>
    %359 = vector.broadcast %358 : vector<1x128xi1> to vector<2x128xi1>
    %360 = vector.shape_cast %285 : vector<2x1xf32> to vector<2x1xf32>
    %361 = vector.broadcast %360 : vector<2x1xf32> to vector<2x128xf32>
    %362 = vector.broadcast %cst_75 : f32 to vector<2x128xf32>
    %363 = arith.select %359, %361, %362 : vector<2x128xi1>, vector<2x128xf32>
    %364 = arith.addf %355, %363 : vector<2x128xf32>
    %c8_i32_76 = arith.constant 8 : i32
    %365 = vector.broadcast %c8_i32_76 : i32 to vector<1x128xi32>
    %366 = arith.cmpi eq, %291, %365 : vector<1x128xi32>
    %cst_77 = arith.constant 0.000000e+00 : f32
    %367 = vector.shape_cast %366 : vector<1x128xi1> to vector<1x128xi1>
    %368 = vector.broadcast %367 : vector<1x128xi1> to vector<2x128xi1>
    %369 = vector.shape_cast %274 : vector<2x1xf32> to vector<2x1xf32>
    %370 = vector.broadcast %369 : vector<2x1xf32> to vector<2x128xf32>
    %371 = vector.broadcast %cst_77 : f32 to vector<2x128xf32>
    %372 = arith.select %368, %370, %371 : vector<2x128xi1>, vector<2x128xf32>
    %373 = arith.addf %364, %372 : vector<2x128xf32>
    %c9_i32_78 = arith.constant 9 : i32
    %374 = vector.broadcast %c9_i32_78 : i32 to vector<1x128xi32>
    %375 = arith.cmpi eq, %291, %374 : vector<1x128xi32>
    %cst_79 = arith.constant 0.000000e+00 : f32
    %376 = vector.shape_cast %375 : vector<1x128xi1> to vector<1x128xi1>
    %377 = vector.broadcast %376 : vector<1x128xi1> to vector<2x128xi1>
    %378 = vector.shape_cast %275 : vector<2x1xf32> to vector<2x1xf32>
    %379 = vector.broadcast %378 : vector<2x1xf32> to vector<2x128xf32>
    %380 = vector.broadcast %cst_79 : f32 to vector<2x128xf32>
    %381 = arith.select %377, %379, %380 : vector<2x128xi1>, vector<2x128xf32>
    %382 = arith.addf %373, %381 : vector<2x128xf32>
    %c10_i32_80 = arith.constant 10 : i32
    %383 = vector.broadcast %c10_i32_80 : i32 to vector<1x128xi32>
    %384 = arith.cmpi eq, %291, %383 : vector<1x128xi32>
    %cst_81 = arith.constant 0.000000e+00 : f32
    %385 = vector.shape_cast %384 : vector<1x128xi1> to vector<1x128xi1>
    %386 = vector.broadcast %385 : vector<1x128xi1> to vector<2x128xi1>
    %387 = vector.shape_cast %246 : vector<2x1xf32> to vector<2x1xf32>
    %388 = vector.broadcast %387 : vector<2x1xf32> to vector<2x128xf32>
    %389 = vector.broadcast %cst_81 : f32 to vector<2x128xf32>
    %390 = arith.select %386, %388, %389 : vector<2x128xi1>, vector<2x128xf32>
    %391 = arith.addf %382, %390 : vector<2x128xf32>
    %c11_i32_82 = arith.constant 11 : i32
    %392 = vector.broadcast %c11_i32_82 : i32 to vector<1x128xi32>
    %393 = arith.cmpi eq, %291, %392 : vector<1x128xi32>
    %cst_83 = arith.constant 0.000000e+00 : f32
    %394 = vector.shape_cast %393 : vector<1x128xi1> to vector<1x128xi1>
    %395 = vector.broadcast %394 : vector<1x128xi1> to vector<2x128xi1>
    %396 = vector.shape_cast %288 : vector<2x1xf32> to vector<2x1xf32>
    %397 = vector.broadcast %396 : vector<2x1xf32> to vector<2x128xf32>
    %398 = vector.broadcast %cst_83 : f32 to vector<2x128xf32>
    %399 = arith.select %395, %397, %398 : vector<2x128xi1>, vector<2x128xf32>
    %400 = arith.addf %391, %399 : vector<2x128xf32>
    %c12_i32_84 = arith.constant 12 : i32
    %401 = vector.broadcast %c12_i32_84 : i32 to vector<1x128xi32>
    %402 = arith.cmpi eq, %291, %401 : vector<1x128xi32>
    %cst_85 = arith.constant 0.000000e+00 : f32
    %403 = vector.shape_cast %402 : vector<1x128xi1> to vector<1x128xi1>
    %404 = vector.broadcast %403 : vector<1x128xi1> to vector<2x128xi1>
    %405 = vector.shape_cast %289 : vector<2x1xf32> to vector<2x1xf32>
    %406 = vector.broadcast %405 : vector<2x1xf32> to vector<2x128xf32>
    %407 = vector.broadcast %cst_85 : f32 to vector<2x128xf32>
    %408 = arith.select %404, %406, %407 : vector<2x128xi1>, vector<2x128xf32>
    %409 = arith.addf %400, %408 : vector<2x128xf32>
    %c13_i32_86 = arith.constant 13 : i32
    %410 = vector.broadcast %c13_i32_86 : i32 to vector<1x128xi32>
    %411 = arith.cmpi eq, %291, %410 : vector<1x128xi32>
    %cst_87 = arith.constant 0.000000e+00 : f32
    %412 = vector.shape_cast %411 : vector<1x128xi1> to vector<1x128xi1>
    %413 = vector.broadcast %412 : vector<1x128xi1> to vector<2x128xi1>
    %414 = vector.shape_cast %289 : vector<2x1xf32> to vector<2x1xf32>
    %415 = vector.broadcast %414 : vector<2x1xf32> to vector<2x128xf32>
    %416 = vector.broadcast %cst_87 : f32 to vector<2x128xf32>
    %417 = arith.select %413, %415, %416 : vector<2x128xi1>, vector<2x128xf32>
    %418 = arith.addf %409, %417 : vector<2x128xf32>
    %c14_i32_88 = arith.constant 14 : i32
    %419 = vector.broadcast %c14_i32_88 : i32 to vector<1x128xi32>
    %420 = arith.cmpi eq, %291, %419 : vector<1x128xi32>
    %cst_89 = arith.constant 0.000000e+00 : f32
    %421 = vector.shape_cast %420 : vector<1x128xi1> to vector<1x128xi1>
    %422 = vector.broadcast %421 : vector<1x128xi1> to vector<2x128xi1>
    %423 = vector.shape_cast %289 : vector<2x1xf32> to vector<2x1xf32>
    %424 = vector.broadcast %423 : vector<2x1xf32> to vector<2x128xf32>
    %425 = vector.broadcast %cst_89 : f32 to vector<2x128xf32>
    %426 = arith.select %422, %424, %425 : vector<2x128xi1>, vector<2x128xf32>
    %427 = arith.addf %418, %426 : vector<2x128xf32>
    %c15_i32_90 = arith.constant 15 : i32
    %428 = vector.broadcast %c15_i32_90 : i32 to vector<1x128xi32>
    %429 = arith.cmpi eq, %291, %428 : vector<1x128xi32>
    %cst_91 = arith.constant 0.000000e+00 : f32
    %430 = vector.shape_cast %429 : vector<1x128xi1> to vector<1x128xi1>
    %431 = vector.broadcast %430 : vector<1x128xi1> to vector<2x128xi1>
    %432 = vector.shape_cast %290 : vector<2x1xf32> to vector<2x1xf32>
    %433 = vector.broadcast %432 : vector<2x1xf32> to vector<2x128xf32>
    %434 = vector.broadcast %cst_91 : f32 to vector<2x128xf32>
    %435 = arith.select %431, %433, %434 : vector<2x128xi1>, vector<2x128xf32>
    %436 = arith.addf %427, %435 : vector<2x128xf32>
    %c0_92 = arith.constant 0 : index
    %c0_93 = arith.constant 0 : index
    %437 = vector.load %arg9[%c0_92, %c0_93] : memref<2x128xf32, #tpu.memory_space<vmem>>, vector<2x128xf32>
    tpu.vector_store %arg9[%c0_92, %c0_93], %436 {strides = array<i32>} : memref<2x128xf32, #tpu.memory_space<vmem>>, vector<2x128xf32>,
    return
  }
}

</mosaic_0001>

<llo_original>
// kernel: tpu_custom_call.1
$region0: #{tpu_custom_call.1}
  #allocation0 [shape = 'u32[]', space=smem, size = 0x4, offset = 0x4, fixed_abs, tag = 'smem constant byte address 0x4 - core index']
  #allocation1 [shape = 'u32[144,128]{1,0:T(1,128)}', space=vmem, size = 0x12000, scoped, tag = 'internal scratch']
  %s0 = inlined_call_operand.hbm [shape: f32[2,8], index: 0, kind: input, shape index: {}]
  %s1 = inlined_call_operand.hbm [shape: f32[2,256], index: 1, kind: input, shape index: {}]
  %s2 = inlined_call_operand.hbm [shape: f32[256,128], index: 2, kind: input, shape index: {}]
  %s3 = inlined_call_operand.hbm [shape: f32[128,128], index: 3, kind: input, shape index: {}]
  %s4 = inlined_call_operand.vmem [shape: f32[1,128], index: 4, kind: input, shape index: {}]
  %s5 = inlined_call_operand.hbm [shape: f32[128,128], index: 5, kind: input, shape index: {}]
  %s6 = inlined_call_operand.vmem [shape: f32[1,128], index: 6, kind: input, shape index: {}]
  %s7 = inlined_call_operand.hbm [shape: f32[128,128], index: 7, kind: input, shape index: {}]
  %s8 = inlined_call_operand.vmem [shape: f32[1,128], index: 8, kind: input, shape index: {}]
  %s9 = inlined_call_operand.hbm [shape: f32[2,128], index: 9, kind: output, shape index: {}]
  %s10 = sld [smem:[#allocation0]]
  $region70: #{tpu_custom_call.1} parent=0
    _
  %s12 = ssub.s32 1, %s10
  %s13 = scalar_select 0, %s12, %s10
  $region1: #{tpu_custom_call.1} parent=0
    #allocation2 [shape = 'u8[1024]{0}', space=vmem, size = 0x400, scoped, tag = 'input window, operand 0, single buffered']
    #allocation3 [shape = 's32[1]{0}', space=sflag, size = 0x4, scoped, tag = 'scoped memory for tpu_custom_call.1']
    #allocation4 [shape = 's32[1]{0}', space=sflag, size = 0x4, scoped, tag = 'scoped memory for tpu_custom_call.1']
    #allocation5 [shape = 'u8[2048]{0}', space=vmem, size = 0x800, scoped, tag = 'input window, operand 1, single buffered']
    #allocation6 [shape = 's32[1]{0}', space=sflag, size = 0x4, scoped, tag = 'scoped memory for tpu_custom_call.1']
    #allocation7 [shape = 'u8[131072]{0}', space=vmem, size = 0x20000, scoped, tag = 'input window, operand 2, single buffered']
    #allocation8 [shape = 'u8[65536]{0}', space=vmem, size = 0x10000, scoped, tag = 'input window, operand 3, single buffered']
    #allocation9 [shape = 's32[1]{0}', space=sflag, size = 0x4, scoped, tag = 'scoped memory for tpu_custom_call.1']
    #allocation10 [shape = 'u8[65536]{0}', space=vmem, size = 0x10000, scoped, tag = 'input window, operand 5, single buffered']
    #allocation11 [shape = 'u8[65536]{0}', space=vmem, size = 0x10000, scoped, tag = 'input window, operand 7, single buffered']
    #allocation12 [shape = 's32[1]{0}', space=sflag, size = 0x4, scoped, tag = 'scoped memory for tpu_custom_call.1']
    #allocation13 [shape = 'u8[1024]{0}', space=vmem, size = 0x400, scoped, tag = 'output window, operand 0, single buffered']
    %14 = vsyncpa [#allocation3], 0
    %15 = vsyncpa [#allocation6], 0
    %16 = vsyncpa [#allocation9], 0
    %17 = vsyncpa [#allocation12], 0
    %18 = vsyncpa [#allocation4], 0
    // Predicated region
    $region2: #{tpu_custom_call.1} parent=1 // pred_check
      _
    $region3: #{tpu_custom_call.1} parent=1 // pred_check_branch
      %20 = sbr.rel (0) target = $region5
    $region4: #{tpu_custom_call.1} parent=1 // pred_region
      %s22 = ssub.s32 32, 32
      %23 = vsyncadd [#allocation3], %s22
      %s25 = sshll.u32 [#allocation2], 4
      %s26 = int_to_ptr.vmem [resolvable:$true] %s25
      %28 = dma.hbm_to_vmem [thread:$0]  %s0, 32, %s26, [#allocation3]
    $region5: #{tpu_custom_call.1} parent=1 // pred_fallthru
      _
    // Predicated region
    $region6: #{tpu_custom_call.1} parent=1 // pred_check
      _
    $region7: #{tpu_custom_call.1} parent=1 // pred_check_branch
      %30 = sbr.rel (0) target = $region9
    $region8: #{tpu_custom_call.1} parent=1 // pred_region
      %s32 = ssub.s32 64, 64
      %33 = vsyncadd [#allocation6], %s32
      %s35 = sshll.u32 [#allocation5], 4
      %s36 = int_to_ptr.vmem [resolvable:$true] %s35
      %38 = dma.hbm_to_vmem [thread:$0]  %s1, 64, %s36, [#allocation6]
    $region9: #{tpu_custom_call.1} parent=1 // pred_fallthru
      _
    // Predicated region
    $region10: #{tpu_custom_call.1} parent=1 // pred_check
      _
    $region11: #{tpu_custom_call.1} parent=1 // pred_check_branch
      %40 = sbr.rel (0) target = $region13
    $region12: #{tpu_custom_call.1} parent=1 // pred_region
      %s42 = ssub.s32 4096, 4096
      %43 = vsyncadd [#allocation6], %s42
      %s44 = sshll.u32 [#allocation7], 4
      %s45 = int_to_ptr.vmem [resolvable:$true] %s44
      %50 = dma.hbm_to_vmem [thread:$0]  %s2, 4096, %s45, [#allocation6], 128, 128, 8
    $region13: #{tpu_custom_call.1} parent=1 // pred_fallthru
      _
    // Predicated region
    $region14: #{tpu_custom_call.1} parent=1 // pred_check
      _
    $region15: #{tpu_custom_call.1} parent=1 // pred_check_branch
      %52 = sbr.rel (0) target = $region17
    $region16: #{tpu_custom_call.1} parent=1 // pred_region
      %s54 = ssub.s32 2048, 2048
      %55 = vsyncadd [#allocation9], %s54
      %s56 = sshll.u32 [#allocation8], 4
      %s57 = int_to_ptr.vmem [resolvable:$true] %s56
      %62 = dma.hbm_to_vmem [thread:$0]  %s3, 2048, %s57, [#allocation9], 128, 128, 8
    $region17: #{tpu_custom_call.1} parent=1 // pred_fallthru
      _
    // Predicated region
    $region18: #{tpu_custom_call.1} parent=1 // pred_check
      _
    $region19: #{tpu_custom_call.1} parent=1 // pred_check_branch
      %64 = sbr.rel (0) target = $region21
    $region20: #{tpu_custom_call.1} parent=1 // pred_region
      _
    $region21: #{tpu_custom_call.1} parent=1 // pred_fallthru
      _
    // Predicated region
    $region22: #{tpu_custom_call.1} parent=1 // pred_check
      _
    $region23: #{tpu_custom_call.1} parent=1 // pred_check_branch
      %66 = sbr.rel (0) target = $region25
    $region24: #{tpu_custom_call.1} parent=1 // pred_region
      %s68 = ssub.s32 2048, 2048
      %69 = vsyncadd [#allocation9], %s68
      %s70 = sshll.u32 [#allocation10], 4
      %s71 = int_to_ptr.vmem [resolvable:$true] %s70
      %76 = dma.hbm_to_vmem [thread:$0]  %s5, 2048, %s71, [#allocation9], 128, 128, 8
    $region25: #{tpu_custom_call.1} parent=1 // pred_fallthru
      _
    // Predicated region
    $region26: #{tpu_custom_call.1} parent=1 // pred_check
      _
    $region27: #{tpu_custom_call.1} parent=1 // pred_check_branch
      %78 = sbr.rel (0) target = $region29
    $region28: #{tpu_custom_call.1} parent=1 // pred_region
      _
    $region29: #{tpu_custom_call.1} parent=1 // pred_fallthru
      _
    // Predicated region
    $region30: #{tpu_custom_call.1} parent=1 // pred_check
      _
    $region31: #{tpu_custom_call.1} parent=1 // pred_check_branch
      %80 = sbr.rel (0) target = $region33
    $region32: #{tpu_custom_call.1} parent=1 // pred_region
      %s82 = ssub.s32 2048, 2048
      %83 = vsyncadd [#allocation12], %s82
      %s84 = sshll.u32 [#allocation11], 4
      %s85 = int_to_ptr.vmem [resolvable:$true] %s84
      %90 = dma.hbm_to_vmem [thread:$0]  %s7, 2048, %s85, [#allocation12], 128, 128, 8
    $region33: #{tpu_custom_call.1} parent=1 // pred_fallthru
      _
    // Predicated region
    $region34: #{tpu_custom_call.1} parent=1 // pred_check
      _
    $region35: #{tpu_custom_call.1} parent=1 // pred_check_branch
      %92 = sbr.rel (0) target = $region37
    $region36: #{tpu_custom_call.1} parent=1 // pred_region
      _
    $region37: #{tpu_custom_call.1} parent=1 // pred_fallthru
      _
    // Predicated region
    $region38: #{tpu_custom_call.1} parent=1 // pred_check
      _
    $region39: #{tpu_custom_call.1} parent=1 // pred_check_branch
      %94 = sbr.rel (0) target = $region41
    $region40: #{tpu_custom_call.1} parent=1 // pred_region
      %95 = dma.done [#allocation3], 32
    $region41: #{tpu_custom_call.1} parent=1 // pred_fallthru
      _
    // Predicated region
    $region42: #{tpu_custom_call.1} parent=1 // pred_check
      _
    $region43: #{tpu_custom_call.1} parent=1 // pred_check_branch
      %97 = sbr.rel (0) target = $region45
    $region44: #{tpu_custom_call.1} parent=1 // pred_region
      %98 = dma.done [#allocation6], 64
    $region45: #{tpu_custom_call.1} parent=1 // pred_fallthru
      _
    // Predicated region
    $region46: #{tpu_custom_call.1} parent=1 // pred_check
      _
    $region47: #{tpu_custom_call.1} parent=1 // pred_check_branch
      %100 = sbr.rel (0) target = $region49
    $region48: #{tpu_custom_call.1} parent=1 // pred_region
      %101 = dma.done [#allocation6], 4096
    $region49: #{tpu_custom_call.1} parent=1 // pred_fallthru
      _
    // Predicated region
    $region50: #{tpu_custom_call.1} parent=1 // pred_check
      _
    $region51: #{tpu_custom_call.1} parent=1 // pred_check_branch
      %103 = sbr.rel (0) target = $region53
    $region52: #{tpu_custom_call.1} parent=1 // pred_region
      %104 = dma.done [#allocation9], 2048
    $region53: #{tpu_custom_call.1} parent=1 // pred_fallthru
      _
    // Predicated region
    $region54: #{tpu_custom_call.1} parent=1 // pred_check
      _
    $region55: #{tpu_custom_call.1} parent=1 // pred_check_branch
      %106 = sbr.rel (0) target = $region57
    $region56: #{tpu_custom_call.1} parent=1 // pred_region
      %107 = dma.done [#allocation9], 2048
    $region57: #{tpu_custom_call.1} parent=1 // pred_fallthru
      _
    // Predicated region
    $region58: #{tpu_custom_call.1} parent=1 // pred_check
      _
    $region59: #{tpu_custom_call.1} parent=1 // pred_check_branch
      %109 = sbr.rel (0) target = $region61
    $region60: #{tpu_custom_call.1} parent=1 // pred_region
      %110 = dma.done [#allocation12], 2048
    $region61: #{tpu_custom_call.1} parent=1 // pred_fallthru
      _
    %v111 = vld [vmem:[#allocation2] sm:$0x3]
    %v112 = vmul.f32 %v111, 0.017453292
    %v113 = vand.u32 2147483647, %v112
    %vm114 = vcmp.le.f32.partialorder %v113, 0.7853982
    %vm115 = vcmp.lt.s32.totalorder %v112, 0
    %v116 = vand.u32 %v112, 2139095040
    %v117 = vshrl.u32 %v116, 23
    %v118 = vsub.s32 %v117, 127
    %v119 = vand.u32 2147483647, %v112
    %v120 = vand.u32 %v119, 8388607
    %v121 = vor.u32 %v120, 8388608
    %v122 = vsub.s32 0, %v121
    %v123 = vadd.s32 %v118, 1
    %vm124 = vcmp.gt.s32.totalorder %v123, 0
    %v125 = vsel %vm124, %v123, 0
    %v126 = vshrl.u32 %v125, 5
    %v127 = vand.u32 %v125, 31
    %v128 = vsub.s32 32, %v127
    %v129 = vshrl.u32 683565275, %v128
    %v130 = vshll.u32 683565275, %v127
    %v131 = vshrl.u32 2475754826, %v128
    %v132 = vor.u32 %v130, %v131
    %v133 = vshll.u32 2475754826, %v127
    %v134 = vshrl.u32 2131351028, %v128
    %v135 = vor.u32 %v133, %v134
    %v136 = vshll.u32 2131351028, %v127
    %v137 = vshrl.u32 2102212464, %v128
    %v138 = vor.u32 %v136, %v137
    %v139 = vshll.u32 2102212464, %v127
    %v140 = vshrl.u32 920167782, %v128
    %v141 = vor.u32 %v139, %v140
    %v142 = vshll.u32 920167782, %v127
    %v143 = vshrl.u32 1326507024, %v128
    %v144 = vor.u32 %v142, %v143
    %vm145 = vcmp.lt.s32.totalorder %v126, 1
    %vm146 = vcmp.lt.s32.totalorder %v126, 2
    %vm147 = vcmp.lt.s32.totalorder %v126, 3
    %vm148 = vcmp.lt.s32.totalorder %v126, 4
    %v149 = vsel %vm145, %v129, %v132
    %v150 = vsel %vm148, %v138, 2102212464
    %v151 = vsel %vm147, %v135, %v150
    %v152 = vsel %vm146, %v149, %v151
    %v153 = vsel %vm145, %v132, %v135
    %v154 = vsel %vm148, %v141, 920167782
    %v155 = vsel %vm147, %v138, %v154
    %v156 = vsel %vm146, %v153, %v155
    %v157 = vsel %vm145, %v135, %v138
    %v158 = vsel %vm148, %v144, 1326507024
    %v159 = vsel %vm147, %v141, %v158
    %v160 = vsel %vm146, %v157, %v159
    %v161 = vshll.u32 %v121, 8
    %v162 = vmul.u32.u64.compose %v161, %v160
    %v163 = vextract.low.u32 %v162
    %v164 = vextract.high.u32 %v162
    %v165 = vmul.u32.u64.compose %v161, %v156
    %v166 = vextract.low.u32 %v165
    %v167 = vextract.high.u32 %v165
    %v168 = vmul.u32 %v161, %v152
    %v169 = vadd.s32 %v164, %v166
    %vm170 = vc.u32 %v164, %v166
    %v171 = vadd.s32 %v167, 1
    %v172 = vsel %vm170, %v171, %v167
    %v173 = vadd.s32 %v168, %v172
    %v174 = vadd.s32 %v173, 536870912
    %v175 = vshrl.u32 %v174, 30
    %v176 = vshll.u32 %v175, 30
    %v177 = vsub.s32 %v173, %v176
    %vm178 = vcmp.lt.s32.totalorder %v177, 0
    %v179 = vsub.s32 0, %v177
    %v180 = vsel %vm178, %v179, %v177
    %v181 = vclz %v180
    %v182 = vsub.s32 %v181, 2
    %vm183 = vcmp.gt.s32.totalorder 0, %v182
    %v184 = vsel %vm183, 0, %v182
    %v185 = vsub.s32 32, %v184
    %v186 = vshll.u32 %v177, %v184
    %v187 = vshrl.u32 %v169, %v185
    %v188 = vor.u32 %v186, %v187
    %v189 = vsub.s32 4294967266, %v184
    %v190 = vadd.s32 %v189, 127
    %v191 = vshll.u32 %v190, 23
    %v192 = vor.u32 4788187, %v191
    %v193 = vand.u32 2147483647, %v192
    %v195 = vcvt.s32.f32 %v188
    %v196 = vmul.f32 %v195, %v193
    %v197 = vxor.u32 %v196, 2147483648
    %v198 = vsel %vm115, %v197, %v196
    %v199 = vsub.s32 4, %v175
    %v200 = vsel %vm115, %v199, %v175
    %v201 = vsel %vm114, %v112, %v198
    %v202 = vsel %vm114, 0, %v200
    %v203 = vcosq.f32.pop %v201
    %v204 = vsinq.f32.pop %v201
    %vm205 = vweird.f32 %v112
    %v206 = vand.u32 %v202, 3
    %vm207 = vcmp.lt.s32.totalorder %v206, 2
    %vm208 = vcmp.eq.s32.totalorder %v206, 0
    %v209 = vxor.u32 %v204, 2147483648
    %v210 = vsel %vm208, %v203, %v209
    %vm211 = vcmp.eq.s32.totalorder %v206, 2
    %v212 = vxor.u32 %v203, 2147483648
    %v213 = vsel %vm211, %v212, %v204
    %v214 = vsel %vm207, %v210, %v213
    %v215 = vsel %vm205, nan, %v214
    %v216 = vand.u32 2147483647, %v112
    %vm217 = vcmp.le.f32.partialorder %v216, 0.7853982
    %vm218 = vcmp.lt.s32.totalorder %v112, 0
    %v219 = vand.u32 %v112, 2139095040
    %v220 = vshrl.u32 %v219, 23
    %v221 = vsub.s32 %v220, 127
    %v222 = vand.u32 2147483647, %v112
    %v223 = vand.u32 %v222, 8388607
    %v224 = vor.u32 %v223, 8388608
    %v225 = vsub.s32 0, %v224
    %v226 = vadd.s32 %v221, 1
    %vm227 = vcmp.gt.s32.totalorder %v226, 0
    %v228 = vsel %vm227, %v226, 0
    %v229 = vshrl.u32 %v228, 5
    %v230 = vand.u32 %v228, 31
    %v231 = vsub.s32 32, %v230
    %v232 = vshrl.u32 683565275, %v231
    %v233 = vshll.u32 683565275, %v230
    %v234 = vshrl.u32 2475754826, %v231
    %v235 = vor.u32 %v233, %v234
    %v236 = vshll.u32 2475754826, %v230
    %v237 = vshrl.u32 2131351028, %v231
    %v238 = vor.u32 %v236, %v237
    %v239 = vshll.u32 2131351028, %v230
    %v240 = vshrl.u32 2102212464, %v231
    %v241 = vor.u32 %v239, %v240
    %v242 = vshll.u32 2102212464, %v230
    %v243 = vshrl.u32 920167782, %v231
    %v244 = vor.u32 %v242, %v243
    %v245 = vshll.u32 920167782, %v230
    %v246 = vshrl.u32 1326507024, %v231
    %v247 = vor.u32 %v245, %v246
    %vm248 = vcmp.lt.s32.totalorder %v229, 1
    %vm249 = vcmp.lt.s32.totalorder %v229, 2
    %vm250 = vcmp.lt.s32.totalorder %v229, 3
    %vm251 = vcmp.lt.s32.totalorder %v229, 4
    %v252 = vsel %vm248, %v232, %v235
    %v253 = vsel %vm251, %v241, 2102212464
    %v254 = vsel %vm250, %v238, %v253
    %v255 = vsel %vm249, %v252, %v254
    %v256 = vsel %vm248, %v235, %v238
    %v257 = vsel %vm251, %v244, 920167782
    %v258 = vsel %vm250, %v241, %v257
    %v259 = vsel %vm249, %v256, %v258
    %v260 = vsel %vm248, %v238, %v241
    %v261 = vsel %vm251, %v247, 1326507024
    %v262 = vsel %vm250, %v244, %v261
    %v263 = vsel %vm249, %v260, %v262
    %v264 = vshll.u32 %v224, 8
    %v265 = vmul.u32.u64.compose %v264, %v263
    %v266 = vextract.low.u32 %v265
    %v267 = vextract.high.u32 %v265
    %v268 = vmul.u32.u64.compose %v264, %v259
    %v269 = vextract.low.u32 %v268
    %v270 = vextract.high.u32 %v268
    %v271 = vmul.u32 %v264, %v255
    %v272 = vadd.s32 %v267, %v269
    %vm273 = vc.u32 %v267, %v269
    %v274 = vadd.s32 %v270, 1
    %v275 = vsel %vm273, %v274, %v270
    %v276 = vadd.s32 %v271, %v275
    %v277 = vadd.s32 %v276, 536870912
    %v278 = vshrl.u32 %v277, 30
    %v279 = vshll.u32 %v278, 30
    %v280 = vsub.s32 %v276, %v279
    %vm281 = vcmp.lt.s32.totalorder %v280, 0
    %v282 = vsub.s32 0, %v280
    %v283 = vsel %vm281, %v282, %v280
    %v284 = vclz %v283
    %v285 = vsub.s32 %v284, 2
    %vm286 = vcmp.gt.s32.totalorder 0, %v285
    %v287 = vsel %vm286, 0, %v285
    %v288 = vsub.s32 32, %v287
    %v289 = vshll.u32 %v280, %v287
    %v290 = vshrl.u32 %v272, %v288
    %v291 = vor.u32 %v289, %v290
    %v292 = vsub.s32 4294967266, %v287
    %v293 = vadd.s32 %v292, 127
    %v294 = vshll.u32 %v293, 23
    %v295 = vor.u32 4788187, %v294
    %v296 = vand.u32 2147483647, %v295
    %v298 = vcvt.s32.f32 %v291
    %v299 = vmul.f32 %v298, %v296
    %v300 = vxor.u32 %v299, 2147483648
    %v301 = vsel %vm218, %v300, %v299
    %v302 = vsub.s32 4, %v278
    %v303 = vsel %vm218, %v302, %v278
    %v304 = vsel %vm217, %v112, %v301
    %v305 = vsel %vm217, 0, %v303
    %v306 = vcosq.f32.pop %v304
    %v307 = vsinq.f32.pop %v304
    %vm308 = vweird.f32 %v112
    %v309 = vadd.s32 %v305, 3
    %v310 = vand.u32 %v309, 3
    %vm311 = vcmp.lt.s32.totalorder %v310, 2
    %vm312 = vcmp.eq.s32.totalorder %v310, 0
    %v313 = vxor.u32 %v307, 2147483648
    %v314 = vsel %vm312, %v306, %v313
    %vm315 = vcmp.eq.s32.totalorder %v310, 2
    %v316 = vxor.u32 %v306, 2147483648
    %v317 = vsel %vm315, %v316, %v307
    %v318 = vsel %vm311, %v314, %v317
    %v319 = vsel %vm308, nan, %v318
    %321 = vrot.lane.b32.xlu0 %v215, 127
    %v322 = vpop.permute.xlu0 %321
    %v324 = vmul.f32 %v215, %v322
    %325 = vrot.lane.b32.xlu0 %v215, 126
    %v326 = vpop.permute.xlu0 %325
    %v328 = vmul.f32 %v324, %v326
    %330 = vrot.lane.b32.xlu0 %v319, 126
    %v331 = vpop.permute.xlu0 %330
    %v333 = vmul.f32 %v319, %v331
    %v334 = vsub.f32 %v328, %v333
    %v335 = vsub.f32 0.0, %v215
    %v336 = vmul.f32 %v335, %v322
    %v337 = vmul.f32 %v336, %v331
    %v338 = vmul.f32 %v319, %v326
    %v339 = vsub.f32 %v337, %v338
    %340 = vrot.lane.b32.xlu0 %v319, 127
    %v341 = vpop.permute.xlu0 %340
    %v343 = vmul.f32 %v215, %v341
    %v344 = vmul.f32 %v319, %v322
    %v345 = vmul.f32 %v344, %v326
    %v346 = vmul.f32 %v215, %v331
    %v347 = vadd.f32 %v345, %v346
    %v348 = vsub.f32 0.0, %v319
    %v349 = vmul.f32 %v348, %v322
    %v350 = vmul.f32 %v349, %v331
    %v351 = vmul.f32 %v215, %v326
    %v352 = vadd.f32 %v350, %v351
    %v353 = vmul.f32 %v319, %v341
    %v354 = vsub.f32 0.0, %v111
    %356 = vrot.lane.b32.xlu0 %v354, 124
    %v357 = vpop.permute.xlu0 %356
    %v359 = vmul.f32 %v334, %v357
    %360 = vrot.lane.b32.xlu0 %v354, 125
    %v361 = vpop.permute.xlu0 %360
    %v363 = vmul.f32 %v339, %v361
    %v364 = vadd.f32 %v359, %v363
    %v365 = vmul.f32 %v347, %v357
    %v366 = vmul.f32 %v352, %v361
    %v367 = vadd.f32 %v365, %v366
    %v368 = vmul.f32 %v349, %v361
    %369 = vrot.lane.b32.xlu0 %v354, 126
    %v370 = vpop.permute.xlu0 %369
    %v372 = vmul.f32 %v353, %v370
    %v373 = vadd.f32 %v368, %v372
    %v374 = vlaneseq
    %v375 = vand.u32 %v374, 127
    %vm376 = vcmp.eq.s32.totalorder %v375, 0
    %v377 = vsel %vm376, 1, 0
    %vm378 = vcmp.eq.s32.totalorder %v377, 1
    %380 = vset.pattern.permute.xlu0 0
    %381 = vperm.xlu0 %380, %v334
    %v382 = vpop.permute.xlu0 %381
    %v384 = vsel %vm378, %v382, 0.0
    %v385 = vadd.f32 %v384, 0.0
    %vm386 = vcmp.eq.s32.totalorder %v375, 1
    %v387 = vsel %vm386, 1, 0
    %vm388 = vcmp.eq.s32.totalorder %v387, 1
    %390 = vset.pattern.permute.xlu0 0
    %391 = vperm.xlu0 %390, %v339
    %v392 = vpop.permute.xlu0 %391
    %v394 = vsel %vm388, %v392, 0.0
    %v395 = vadd.f32 %v385, %v394
    %vm396 = vcmp.eq.s32.totalorder %v375, 2
    %v397 = vsel %vm396, 1, 0
    %vm398 = vcmp.eq.s32.totalorder %v397, 1
    %400 = vset.pattern.permute.xlu0 0
    %401 = vperm.xlu0 %400, %v343
    %v402 = vpop.permute.xlu0 %401
    %v404 = vsel %vm398, %v402, 0.0
    %v405 = vadd.f32 %v395, %v404
    %vm406 = vcmp.eq.s32.totalorder %v375, 3
    %v407 = vsel %vm406, 1, 0
    %vm408 = vcmp.eq.s32.totalorder %v407, 1
    %410 = vset.pattern.permute.xlu0 0
    %411 = vperm.xlu0 %410, %v364
    %v412 = vpop.permute.xlu0 %411
    %v414 = vsel %vm408, %v412, 0.0
    %v415 = vadd.f32 %v405, %v414
    %vm416 = vcmp.eq.s32.totalorder %v375, 4
    %v417 = vsel %vm416, 1, 0
    %vm418 = vcmp.eq.s32.totalorder %v417, 1
    %420 = vset.pattern.permute.xlu0 0
    %421 = vperm.xlu0 %420, %v347
    %v422 = vpop.permute.xlu0 %421
    %v424 = vsel %vm418, %v422, 0.0
    %v425 = vadd.f32 %v415, %v424
    %vm426 = vcmp.eq.s32.totalorder %v375, 5
    %v427 = vsel %vm426, 1, 0
    %vm428 = vcmp.eq.s32.totalorder %v427, 1
    %430 = vset.pattern.permute.xlu0 0
    %431 = vperm.xlu0 %430, %v352
    %v432 = vpop.permute.xlu0 %431
    %v434 = vsel %vm428, %v432, 0.0
    %v435 = vadd.f32 %v425, %v434
    %vm436 = vcmp.eq.s32.totalorder %v375, 6
    %v437 = vsel %vm436, 1, 0
    %vm438 = vcmp.eq.s32.totalorder %v437, 1
    %440 = vset.pattern.permute.xlu0 0
    %441 = vperm.xlu0 %440, %v353
    %v442 = vpop.permute.xlu0 %441
    %v444 = vsel %vm438, %v442, 0.0
    %v445 = vadd.f32 %v435, %v444
    %vm446 = vcmp.eq.s32.totalorder %v375, 7
    %v447 = vsel %vm446, 1, 0
    %vm448 = vcmp.eq.s32.totalorder %v447, 1
    %450 = vset.pattern.permute.xlu0 0
    %451 = vperm.xlu0 %450, %v367
    %v452 = vpop.permute.xlu0 %451
    %v454 = vsel %vm448, %v452, 0.0
    %v455 = vadd.f32 %v445, %v454
    %vm456 = vcmp.eq.s32.totalorder %v375, 8
    %v457 = vsel %vm456, 1, 0
    %vm458 = vcmp.eq.s32.totalorder %v457, 1
    %460 = vset.pattern.permute.xlu0 1
    %461 = vperm.xlu0 %460, %v349
    %v462 = vpop.permute.xlu0 %461
    %v464 = vsel %vm458, %v462, 0.0
    %v465 = vadd.f32 %v455, %v464
    %vm466 = vcmp.eq.s32.totalorder %v375, 9
    %v467 = vsel %vm466, 1, 0
    %vm468 = vcmp.eq.s32.totalorder %v467, 1
    %469 = vset.pattern.permute.xlu0 1
    %470 = vperm.xlu0 %469, %v353
    %v471 = vpop.permute.xlu0 %470
    %v473 = vsel %vm468, %v471, 0.0
    %v474 = vadd.f32 %v465, %v473
    %vm475 = vcmp.eq.s32.totalorder %v375, 10
    %v476 = vsel %vm475, 1, 0
    %vm477 = vcmp.eq.s32.totalorder %v476, 1
    %478 = vset.pattern.permute.xlu0 1
    %479 = vperm.xlu0 %478, %v215
    %v480 = vpop.permute.xlu0 %479
    %v482 = vsel %vm477, %v480, 0.0
    %v483 = vadd.f32 %v474, %v482
    %vm484 = vcmp.eq.s32.totalorder %v375, 11
    %v485 = vsel %vm484, 1, 0
    %vm486 = vcmp.eq.s32.totalorder %v485, 1
    %488 = vset.pattern.permute.xlu0 1
    %489 = vperm.xlu0 %488, %v373
    %v490 = vpop.permute.xlu0 %489
    %v492 = vsel %vm486, %v490, 0.0
    %v493 = vadd.f32 %v483, %v492
    %v494 = vadd.f32 %v493, 0.0
    %v495 = vadd.f32 %v494, 0.0
    %v496 = vadd.f32 %v495, 0.0
    %vm497 = vcmp.eq.s32.totalorder %v375, 15
    %v498 = vsel %vm497, 1, 0
    %vm499 = vcmp.eq.s32.totalorder %v498, 1
    %v500 = vsel %vm499, 1.0, 0.0
    %v501 = vadd.f32 %v496, %v500
    %v502 = vld [vmem:[#allocation5] sm:$0xf]
    %v503 = vld [vmem:[#allocation7] sm:$0xff]
    %v504 = vld [vmem:[#allocation7 + $0x8] sm:$0xff]
    %v505 = vld [vmem:[#allocation7 + $0x10] sm:$0xff]
    %v506 = vld [vmem:[#allocation7 + $0x18] sm:$0xff]
    %v507 = vld [vmem:[#allocation7 + $0x20] sm:$0xff]
    %v508 = vld [vmem:[#allocation7 + $0x28] sm:$0xff]
    %v509 = vld [vmem:[#allocation7 + $0x30] sm:$0xff]
    %v510 = vld [vmem:[#allocation7 + $0x38] sm:$0xff]
    %v511 = vld [vmem:[#allocation7 + $0x40] sm:$0xff]
    %v512 = vld [vmem:[#allocation7 + $0x48] sm:$0xff]
    %v513 = vld [vmem:[#allocation7 + $0x50] sm:$0xff]
    %v514 = vld [vmem:[#allocation7 + $0x58] sm:$0xff]
    %v515 = vld [vmem:[#allocation7 + $0x60] sm:$0xff]
    %v516 = vld [vmem:[#allocation7 + $0x68] sm:$0xff]
    %v517 = vld [vmem:[#allocation7 + $0x70] sm:$0xff]
    %v518 = vld [vmem:[#allocation7 + $0x78] sm:$0xff]
    %v519 = vld [vmem:[#allocation7 + $0x80] sm:$0xff]
    %v520 = vld [vmem:[#allocation7 + $0x88] sm:$0xff]
    %v521 = vld [vmem:[#allocation7 + $0x90] sm:$0xff]
    %v522 = vld [vmem:[#allocation7 + $0x98] sm:$0xff]
    %v523 = vld [vmem:[#allocation7 + $0xa0] sm:$0xff]
    %v524 = vld [vmem:[#allocation7 + $0xa8] sm:$0xff]
    %v525 = vld [vmem:[#allocation7 + $0xb0] sm:$0xff]
    %v526 = vld [vmem:[#allocation7 + $0xb8] sm:$0xff]
    %v527 = vld [vmem:[#allocation7 + $0xc0] sm:$0xff]
    %v528 = vld [vmem:[#allocation7 + $0xc8] sm:$0xff]
    %v529 = vld [vmem:[#allocation7 + $0xd0] sm:$0xff]
    %v530 = vld [vmem:[#allocation7 + $0xd8] sm:$0xff]
    %v531 = vld [vmem:[#allocation7 + $0xe0] sm:$0xff]
    %v532 = vld [vmem:[#allocation7 + $0xe8] sm:$0xff]
    %v533 = vld [vmem:[#allocation7 + $0xf0] sm:$0xff]
    %v534 = vld [vmem:[#allocation7 + $0xf8] sm:$0xff]
    %v535 = vld [vmem:[#allocation8] sm:$0xff]
    %v536 = vld [vmem:[#allocation8 + $0x8] sm:$0xff]
    %v537 = vld [vmem:[#allocation8 + $0x10] sm:$0xff]
    %v538 = vld [vmem:[#allocation8 + $0x18] sm:$0xff]
    %v539 = vld [vmem:[#allocation8 + $0x20] sm:$0xff]
    %v540 = vld [vmem:[#allocation8 + $0x28] sm:$0xff]
    %v541 = vld [vmem:[#allocation8 + $0x30] sm:$0xff]
    %v542 = vld [vmem:[#allocation8 + $0x38] sm:$0xff]
    %v543 = vld [vmem:[#allocation8 + $0x40] sm:$0xff]
    %v544 = vld [vmem:[#allocation8 + $0x48] sm:$0xff]
    %v545 = vld [vmem:[#allocation8 + $0x50] sm:$0xff]
    %v546 = vld [vmem:[#allocation8 + $0x58] sm:$0xff]
    %v547 = vld [vmem:[#allocation8 + $0x60] sm:$0xff]
    %v548 = vld [vmem:[#allocation8 + $0x68] sm:$0xff]
    %v549 = vld [vmem:[#allocation8 + $0x70] sm:$0xff]
    %v550 = vld [vmem:[#allocation8 + $0x78] sm:$0xff]
    %551 = vmatprep.subr.mxu0 0.0
    %552 = vmatpush1.msra.mxu0 %v535
    %553 = vmatprep.subr.mxu0 0.0
    %554 = vmatpush1.msra.mxu0 %v536
    %555 = vmatprep.subr.mxu0 0.0
    %556 = vmatpush1.msra.mxu0 %v537
    %557 = vmatprep.subr.mxu0 0.0
    %558 = vmatpush1.msra.mxu0 %v538
    %559 = vmatprep.subr.mxu0 0.0
    %560 = vmatpush1.msra.mxu0 %v539
    %561 = vmatprep.subr.mxu0 0.0
    %562 = vmatpush1.msra.mxu0 %v540
    %563 = vmatprep.subr.mxu0 0.0
    %564 = vmatpush1.msra.mxu0 %v541
    %565 = vmatprep.subr.mxu0 0.0
    %566 = vmatpush1.msra.mxu0 %v542
    %567 = vmatprep.subr.mxu0 0.0
    %568 = vmatpush1.msra.mxu0 %v543
    %569 = vmatprep.subr.mxu0 0.0
    %570 = vmatpush1.msra.mxu0 %v544
    %571 = vmatprep.subr.mxu0 0.0
    %572 = vmatpush1.msra.mxu0 %v545
    %573 = vmatprep.subr.mxu0 0.0
    %574 = vmatpush1.msra.mxu0 %v546
    %575 = vmatprep.subr.mxu0 0.0
    %576 = vmatpush1.msra.mxu0 %v547
    %577 = vmatprep.subr.mxu0 0.0
    %578 = vmatpush1.msra.mxu0 %v548
    %579 = vmatprep.subr.mxu0 0.0
    %580 = vmatpush1.msra.mxu0 %v549
    %581 = vmatprep.subr.mxu0 0.0
    %582 = vmatpush1.msra.mxu0 %v550
    %583 = vmatprep.subr.mxu0 0.0
    %584 = vmatpush1.msra.mxu0 0.0
    %585 = vmatprep.subr.mxu0 0.0
    %586 = vmatpush1.msra.mxu0 0.0
    %587 = vmatprep.subr.mxu0 0.0
    %588 = vmatpush1.msra.mxu0 0.0
    %589 = vmatprep.subr.mxu0 0.0
    %590 = vmatpush1.msra.mxu0 0.0
    %591 = vmatprep.subr.mxu0 0.0
    %592 = vmatpush1.msra.mxu0 0.0
    %593 = vmatprep.subr.mxu0 0.0
    %594 = vmatpush1.msra.mxu0 0.0
    %595 = vmatprep.subr.mxu0 0.0
    %596 = vmatpush1.msra.mxu0 0.0
    %597 = vmatprep.subr.mxu0 0.0
    %598 = vmatpush1.msra.mxu0 0.0
    %599 = vmatprep.subr.mxu0 0.0
    %600 = vmatpush1.msra.mxu0 0.0
    %601 = vmatprep.subr.mxu0 0.0
    %602 = vmatpush1.msra.mxu0 0.0
    %603 = vmatprep.subr.mxu0 0.0
    %604 = vmatpush1.msra.mxu0 0.0
    %605 = vmatprep.subr.mxu0 0.0
    %606 = vmatpush1.msra.mxu0 0.0
    %607 = vmatprep.subr.mxu0 0.0
    %608 = vmatpush1.msra.mxu0 0.0
    %609 = vmatprep.subr.mxu0 0.0
    %610 = vmatpush1.msra.mxu0 0.0
    %611 = vmatprep.subr.mxu0 0.0
    %612 = vmatpush1.msra.mxu0 0.0
    %613 = vmatprep.subr.mxu0 0.0
    %614 = vmatpush1.msra.mxu0 0.0
    %615 = vmatprep.mubr.f32.mxu0 0.0
    %616 = vmatmul.mubr.f32.gmra.mrb[0].mxu0 %v501
    %v617 = vpop.f32.mrb[0].mxu0
    %v618 = vadd.f32 0.0, %v617
    %v619 = vpop.f32.mrb[0].mxu0
    %620 = vdwg.mxu0
    %v623 = vunpack.c.l.s4 1983009808
    %v624 = vunpack.c.0.s8 %v623
    %v625 = vlaneseq
    %v626 = vshrl.u32 %v625, 7
    %v627 = vsub.s32 %v624, %v626
    %v628 = vrot.slane %v502, %v627
    %v629 = vcombine.high %v628, %v628
    %632 = vmatprep.subr.mxu0 0.0
    %633 = vmatpush1.msra.mxu0 %v503
    %634 = vmatprep.subr.mxu0 0.0
    %635 = vmatpush1.msra.mxu0 %v504
    %636 = vmatprep.subr.mxu0 0.0
    %637 = vmatpush1.msra.mxu0 %v505
    %638 = vmatprep.subr.mxu0 0.0
    %639 = vmatpush1.msra.mxu0 %v506
    %640 = vmatprep.subr.mxu0 0.0
    %641 = vmatpush1.msra.mxu0 %v507
    %642 = vmatprep.subr.mxu0 0.0
    %643 = vmatpush1.msra.mxu0 %v508
    %644 = vmatprep.subr.mxu0 0.0
    %645 = vmatpush1.msra.mxu0 %v509
    %646 = vmatprep.subr.mxu0 0.0
    %647 = vmatpush1.msra.mxu0 %v510
    %648 = vmatprep.subr.mxu0 0.0
    %649 = vmatpush1.msra.mxu0 %v511
    %650 = vmatprep.subr.mxu0 0.0
    %651 = vmatpush1.msra.mxu0 %v512
    %652 = vmatprep.subr.mxu0 0.0
    %653 = vmatpush1.msra.mxu0 %v513
    %654 = vmatprep.subr.mxu0 0.0
    %655 = vmatpush1.msra.mxu0 %v514
    %656 = vmatprep.subr.mxu0 0.0
    %657 = vmatpush1.msra.mxu0 %v515
    %658 = vmatprep.subr.mxu0 0.0
    %659 = vmatpush1.msra.mxu0 %v516
    %660 = vmatprep.subr.mxu0 0.0
    %661 = vmatpush1.msra.mxu0 %v517
    %662 = vmatprep.subr.mxu0 0.0
    %663 = vmatpush1.msra.mxu0 %v518
    %664 = vmatprep.subr.mxu0 0.0
    %665 = vmatpush1.msra.mxu0 %v519
    %666 = vmatprep.subr.mxu0 0.0
    %667 = vmatpush1.msra.mxu0 %v520
    %668 = vmatprep.subr.mxu0 0.0
    %669 = vmatpush1.msra.mxu0 %v521
    %670 = vmatprep.subr.mxu0 0.0
    %671 = vmatpush1.msra.mxu0 %v522
    %672 = vmatprep.subr.mxu0 0.0
    %673 = vmatpush1.msra.mxu0 %v523
    %674 = vmatprep.subr.mxu0 0.0
    %675 = vmatpush1.msra.mxu0 %v524
    %676 = vmatprep.subr.mxu0 0.0
    %677 = vmatpush1.msra.mxu0 %v525
    %678 = vmatprep.subr.mxu0 0.0
    %679 = vmatpush1.msra.mxu0 %v526
    %680 = vmatprep.subr.mxu0 0.0
    %681 = vmatpush1.msra.mxu0 %v527
    %682 = vmatprep.subr.mxu0 0.0
    %683 = vmatpush1.msra.mxu0 %v528
    %684 = vmatprep.subr.mxu0 0.0
    %685 = vmatpush1.msra.mxu0 %v529
    %686 = vmatprep.subr.mxu0 0.0
    %687 = vmatpush1.msra.mxu0 %v530
    %688 = vmatprep.subr.mxu0 0.0
    %689 = vmatpush1.msra.mxu0 %v531
    %690 = vmatprep.subr.mxu0 0.0
    %691 = vmatpush1.msra.mxu0 %v532
    %692 = vmatprep.subr.mxu0 0.0
    %693 = vmatpush1.msra.mxu0 %v533
    %694 = vmatprep.subr.mxu0 0.0
    %695 = vmatpush1.msra.mxu0 %v534
    %696 = vmatprep.mubr.f32.mxu0 %v629
    %697 = vmatmul.mubr.f32.gmra.mrb[0].mxu0 %v628
    %v698 = vpop.f32.mrb[0].mxu0
    %v699 = vadd.f32 %v618, %v698
    %v700 = vpop.f32.mrb[0].mxu0
    %701 = vdwg.mxu0
    %v702 = vld [vmem:[%s4] sm:$0x1]
    %v704 = vlaneseq
    %v705 = vshrl.u32 %v704, 7
    %v706 = vsub.s32 0, %v705
    %v707 = vrot.slane %v702, %v706
    %v709 = vadd.f32 %v699, %v707
    %v710 = vmax.f32 %v709, 0.0
    %v711 = vld [vmem:[#allocation10] sm:$0xff]
    %v712 = vld [vmem:[#allocation10 + $0x8] sm:$0xff]
    %v713 = vld [vmem:[#allocation10 + $0x10] sm:$0xff]
    %v714 = vld [vmem:[#allocation10 + $0x18] sm:$0xff]
    %v715 = vld [vmem:[#allocation10 + $0x20] sm:$0xff]
    %v716 = vld [vmem:[#allocation10 + $0x28] sm:$0xff]
    %v717 = vld [vmem:[#allocation10 + $0x30] sm:$0xff]
    %v718 = vld [vmem:[#allocation10 + $0x38] sm:$0xff]
    %v719 = vld [vmem:[#allocation10 + $0x40] sm:$0xff]
    %v720 = vld [vmem:[#allocation10 + $0x48] sm:$0xff]
    %v721 = vld [vmem:[#allocation10 + $0x50] sm:$0xff]
    %v722 = vld [vmem:[#allocation10 + $0x58] sm:$0xff]
    %v723 = vld [vmem:[#allocation10 + $0x60] sm:$0xff]
    %v724 = vld [vmem:[#allocation10 + $0x68] sm:$0xff]
    %v725 = vld [vmem:[#allocation10 + $0x70] sm:$0xff]
    %v726 = vld [vmem:[#allocation10 + $0x78] sm:$0xff]
    %v727 = vld [vmem:[%s6] sm:$0x1]
    %v729 = vlaneseq
    %v730 = vshrl.u32 %v729, 7
    %v731 = vsub.s32 0, %v730
    %v732 = vrot.slane %v727, %v731
    %734 = vmatprep.subr.mxu0 0.0
    %735 = vmatpush1.msra.mxu0 %v711
    %736 = vmatprep.subr.mxu0 0.0
    %737 = vmatpush1.msra.mxu0 %v712
    %738 = vmatprep.subr.mxu0 0.0
    %739 = vmatpush1.msra.mxu0 %v713
    %740 = vmatprep.subr.mxu0 0.0
    %741 = vmatpush1.msra.mxu0 %v714
    %742 = vmatprep.subr.mxu0 0.0
    %743 = vmatpush1.msra.mxu0 %v715
    %744 = vmatprep.subr.mxu0 0.0
    %745 = vmatpush1.msra.mxu0 %v716
    %746 = vmatprep.subr.mxu0 0.0
    %747 = vmatpush1.msra.mxu0 %v717
    %748 = vmatprep.subr.mxu0 0.0
    %749 = vmatpush1.msra.mxu0 %v718
    %750 = vmatprep.subr.mxu0 0.0
    %751 = vmatpush1.msra.mxu0 %v719
    %752 = vmatprep.subr.mxu0 0.0
    %753 = vmatpush1.msra.mxu0 %v720
    %754 = vmatprep.subr.mxu0 0.0
    %755 = vmatpush1.msra.mxu0 %v721
    %756 = vmatprep.subr.mxu0 0.0
    %757 = vmatpush1.msra.mxu0 %v722
    %758 = vmatprep.subr.mxu0 0.0
    %759 = vmatpush1.msra.mxu0 %v723
    %760 = vmatprep.subr.mxu0 0.0
    %761 = vmatpush1.msra.mxu0 %v724
    %762 = vmatprep.subr.mxu0 0.0
    %763 = vmatpush1.msra.mxu0 %v725
    %764 = vmatprep.subr.mxu0 0.0
    %765 = vmatpush1.msra.mxu0 %v726
    %766 = vmatprep.subr.mxu0 0.0
    %767 = vmatpush1.msra.mxu0 0.0
    %768 = vmatprep.subr.mxu0 0.0
    %769 = vmatpush1.msra.mxu0 0.0
    %770 = vmatprep.subr.mxu0 0.0
    %771 = vmatpush1.msra.mxu0 0.0
    %772 = vmatprep.subr.mxu0 0.0
    %773 = vmatpush1.msra.mxu0 0.0
    %774 = vmatprep.subr.mxu0 0.0
    %775 = vmatpush1.msra.mxu0 0.0
    %776 = vmatprep.subr.mxu0 0.0
    %777 = vmatpush1.msra.mxu0 0.0
    %778 = vmatprep.subr.mxu0 0.0
    %779 = vmatpush1.msra.mxu0 0.0
    %780 = vmatprep.subr.mxu0 0.0
    %781 = vmatpush1.msra.mxu0 0.0
    %782 = vmatprep.subr.mxu0 0.0
    %783 = vmatpush1.msra.mxu0 0.0
    %784 = vmatprep.subr.mxu0 0.0
    %785 = vmatpush1.msra.mxu0 0.0
    %786 = vmatprep.subr.mxu0 0.0
    %787 = vmatpush1.msra.mxu0 0.0
    %788 = vmatprep.subr.mxu0 0.0
    %789 = vmatpush1.msra.mxu0 0.0
    %790 = vmatprep.subr.mxu0 0.0
    %791 = vmatpush1.msra.mxu0 0.0
    %792 = vmatprep.subr.mxu0 0.0
    %793 = vmatpush1.msra.mxu0 0.0
    %794 = vmatprep.subr.mxu0 0.0
    %795 = vmatpush1.msra.mxu0 0.0
    %796 = vmatprep.subr.mxu0 0.0
    %797 = vmatpush1.msra.mxu0 0.0
    %798 = vmatprep.mubr.f32.mxu0 0.0
    %799 = vmatmul.mubr.f32.gmra.mrb[0].mxu0 %v710
    %v800 = vpop.f32.mrb[0].mxu0
    %v801 = vadd.f32 %v732, %v800
    %v802 = vpop.f32.mrb[0].mxu0
    %803 = vdwg.mxu0
    %v804 = vmax.f32 %v801, 0.0
    %v805 = vld [vmem:[#allocation11] sm:$0xff]
    %v806 = vld [vmem:[#allocation11 + $0x8] sm:$0xff]
    %v807 = vld [vmem:[#allocation11 + $0x10] sm:$0xff]
    %v808 = vld [vmem:[#allocation11 + $0x18] sm:$0xff]
    %v809 = vld [vmem:[#allocation11 + $0x20] sm:$0xff]
    %v810 = vld [vmem:[#allocation11 + $0x28] sm:$0xff]
    %v811 = vld [vmem:[#allocation11 + $0x30] sm:$0xff]
    %v812 = vld [vmem:[#allocation11 + $0x38] sm:$0xff]
    %v813 = vld [vmem:[#allocation11 + $0x40] sm:$0xff]
    %v814 = vld [vmem:[#allocation11 + $0x48] sm:$0xff]
    %v815 = vld [vmem:[#allocation11 + $0x50] sm:$0xff]
    %v816 = vld [vmem:[#allocation11 + $0x58] sm:$0xff]
    %v817 = vld [vmem:[#allocation11 + $0x60] sm:$0xff]
    %v818 = vld [vmem:[#allocation11 + $0x68] sm:$0xff]
    %v819 = vld [vmem:[#allocation11 + $0x70] sm:$0xff]
    %v820 = vld [vmem:[#allocation11 + $0x78] sm:$0xff]
    %v821 = vld [vmem:[%s8] sm:$0x1]
    %v823 = vlaneseq
    %v824 = vshrl.u32 %v823, 7
    %v825 = vsub.s32 0, %v824
    %v826 = vrot.slane %v821, %v825
    %828 = vmatprep.subr.mxu0 0.0
    %829 = vmatpush1.msra.mxu0 %v805
    %830 = vmatprep.subr.mxu0 0.0
    %831 = vmatpush1.msra.mxu0 %v806
    %832 = vmatprep.subr.mxu0 0.0
    %833 = vmatpush1.msra.mxu0 %v807
    %834 = vmatprep.subr.mxu0 0.0
    %835 = vmatpush1.msra.mxu0 %v808
    %836 = vmatprep.subr.mxu0 0.0
    %837 = vmatpush1.msra.mxu0 %v809
    %838 = vmatprep.subr.mxu0 0.0
    %839 = vmatpush1.msra.mxu0 %v810
    %840 = vmatprep.subr.mxu0 0.0
    %841 = vmatpush1.msra.mxu0 %v811
    %842 = vmatprep.subr.mxu0 0.0
    %843 = vmatpush1.msra.mxu0 %v812
    %844 = vmatprep.subr.mxu0 0.0
    %845 = vmatpush1.msra.mxu0 %v813
    %846 = vmatprep.subr.mxu0 0.0
    %847 = vmatpush1.msra.mxu0 %v814
    %848 = vmatprep.subr.mxu0 0.0
    %849 = vmatpush1.msra.mxu0 %v815
    %850 = vmatprep.subr.mxu0 0.0
    %851 = vmatpush1.msra.mxu0 %v816
    %852 = vmatprep.subr.mxu0 0.0
    %853 = vmatpush1.msra.mxu0 %v817
    %854 = vmatprep.subr.mxu0 0.0
    %855 = vmatpush1.msra.mxu0 %v818
    %856 = vmatprep.subr.mxu0 0.0
    %857 = vmatpush1.msra.mxu0 %v819
    %858 = vmatprep.subr.mxu0 0.0
    %859 = vmatpush1.msra.mxu0 %v820
    %860 = vmatprep.subr.mxu0 0.0
    %861 = vmatpush1.msra.mxu0 0.0
    %862 = vmatprep.subr.mxu0 0.0
    %863 = vmatpush1.msra.mxu0 0.0
    %864 = vmatprep.subr.mxu0 0.0
    %865 = vmatpush1.msra.mxu0 0.0
    %866 = vmatprep.subr.mxu0 0.0
    %867 = vmatpush1.msra.mxu0 0.0
    %868 = vmatprep.subr.mxu0 0.0
    %869 = vmatpush1.msra.mxu0 0.0
    %870 = vmatprep.subr.mxu0 0.0
    %871 = vmatpush1.msra.mxu0 0.0
    %872 = vmatprep.subr.mxu0 0.0
    %873 = vmatpush1.msra.mxu0 0.0
    %874 = vmatprep.subr.mxu0 0.0
    %875 = vmatpush1.msra.mxu0 0.0
    %876 = vmatprep.subr.mxu0 0.0
    %877 = vmatpush1.msra.mxu0 0.0
    %878 = vmatprep.subr.mxu0 0.0
    %879 = vmatpush1.msra.mxu0 0.0
    %880 = vmatprep.subr.mxu0 0.0
    %881 = vmatpush1.msra.mxu0 0.0
    %882 = vmatprep.subr.mxu0 0.0
    %883 = vmatpush1.msra.mxu0 0.0
    %884 = vmatprep.subr.mxu0 0.0
    %885 = vmatpush1.msra.mxu0 0.0
    %886 = vmatprep.subr.mxu0 0.0
    %887 = vmatpush1.msra.mxu0 0.0
    %888 = vmatprep.subr.mxu0 0.0
    %889 = vmatpush1.msra.mxu0 0.0
    %890 = vmatprep.subr.mxu0 0.0
    %891 = vmatpush1.msra.mxu0 0.0
    %892 = vmatprep.mubr.f32.mxu0 0.0
    %893 = vmatmul.mubr.f32.gmra.mrb[0].mxu0 %v804
    %v894 = vpop.f32.mrb[0].mxu0
    %v895 = vadd.f32 %v826, %v894
    %v896 = vpop.f32.mrb[0].mxu0
    %897 = vdwg.mxu0
    %v898 = vadd.f32 %v111, %v895
    %v899 = vmul.f32 %v898, 0.017453292
    %v900 = vand.u32 2147483647, %v899
    %vm901 = vcmp.le.f32.partialorder %v900, 0.7853982
    %vm902 = vcmp.lt.s32.totalorder %v899, 0
    %v903 = vand.u32 %v899, 2139095040
    %v904 = vshrl.u32 %v903, 23
    %v905 = vsub.s32 %v904, 127
    %v906 = vand.u32 2147483647, %v899
    %v907 = vand.u32 %v906, 8388607
    %v908 = vor.u32 %v907, 8388608
    %v909 = vsub.s32 0, %v908
    %v910 = vadd.s32 %v905, 1
    %vm911 = vcmp.gt.s32.totalorder %v910, 0
    %v912 = vsel %vm911, %v910, 0
    %v913 = vshrl.u32 %v912, 5
    %v914 = vand.u32 %v912, 31
    %v915 = vsub.s32 32, %v914
    %v916 = vshrl.u32 683565275, %v915
    %v917 = vshll.u32 683565275, %v914
    %v918 = vshrl.u32 2475754826, %v915
    %v919 = vor.u32 %v917, %v918
    %v920 = vshll.u32 2475754826, %v914
    %v921 = vshrl.u32 2131351028, %v915
    %v922 = vor.u32 %v920, %v921
    %v923 = vshll.u32 2131351028, %v914
    %v924 = vshrl.u32 2102212464, %v915
    %v925 = vor.u32 %v923, %v924
    %v926 = vshll.u32 2102212464, %v914
    %v927 = vshrl.u32 920167782, %v915
    %v928 = vor.u32 %v926, %v927
    %v929 = vshll.u32 920167782, %v914
    %v930 = vshrl.u32 1326507024, %v915
    %v931 = vor.u32 %v929, %v930
    %vm932 = vcmp.lt.s32.totalorder %v913, 1
    %vm933 = vcmp.lt.s32.totalorder %v913, 2
    %vm934 = vcmp.lt.s32.totalorder %v913, 3
    %vm935 = vcmp.lt.s32.totalorder %v913, 4
    %v936 = vsel %vm932, %v916, %v919
    %v937 = vsel %vm935, %v925, 2102212464
    %v938 = vsel %vm934, %v922, %v937
    %v939 = vsel %vm933, %v936, %v938
    %v940 = vsel %vm932, %v919, %v922
    %v941 = vsel %vm935, %v928, 920167782
    %v942 = vsel %vm934, %v925, %v941
    %v943 = vsel %vm933, %v940, %v942
    %v944 = vsel %vm932, %v922, %v925
    %v945 = vsel %vm935, %v931, 1326507024
    %v946 = vsel %vm934, %v928, %v945
    %v947 = vsel %vm933, %v944, %v946
    %v948 = vshll.u32 %v908, 8
    %v949 = vmul.u32.u64.compose %v948, %v947
    %v950 = vextract.low.u32 %v949
    %v951 = vextract.high.u32 %v949
    %v952 = vmul.u32.u64.compose %v948, %v943
    %v953 = vextract.low.u32 %v952
    %v954 = vextract.high.u32 %v952
    %v955 = vmul.u32 %v948, %v939
    %v956 = vadd.s32 %v951, %v953
    %vm957 = vc.u32 %v951, %v953
    %v958 = vadd.s32 %v954, 1
    %v959 = vsel %vm957, %v958, %v954
    %v960 = vadd.s32 %v955, %v959
    %v961 = vadd.s32 %v960, 536870912
    %v962 = vshrl.u32 %v961, 30
    %v963 = vshll.u32 %v962, 30
    %v964 = vsub.s32 %v960, %v963
    %vm965 = vcmp.lt.s32.totalorder %v964, 0
    %v966 = vsub.s32 0, %v964
    %v967 = vsel %vm965, %v966, %v964
    %v968 = vclz %v967
    %v969 = vsub.s32 %v968, 2
    %vm970 = vcmp.gt.s32.totalorder 0, %v969
    %v971 = vsel %vm970, 0, %v969
    %v972 = vsub.s32 32, %v971
    %v973 = vshll.u32 %v964, %v971
    %v974 = vshrl.u32 %v956, %v972
    %v975 = vor.u32 %v973, %v974
    %v976 = vsub.s32 4294967266, %v971
    %v977 = vadd.s32 %v976, 127
    %v978 = vshll.u32 %v977, 23
    %v979 = vor.u32 4788187, %v978
    %v980 = vand.u32 2147483647, %v979
    %v982 = vcvt.s32.f32 %v975
    %v983 = vmul.f32 %v982, %v980
    %v984 = vxor.u32 %v983, 2147483648
    %v985 = vsel %vm902, %v984, %v983
    %v986 = vsub.s32 4, %v962
    %v987 = vsel %vm902, %v986, %v962
    %v988 = vsel %vm901, %v899, %v985
    %v989 = vsel %vm901, 0, %v987
    %v990 = vcosq.f32.pop %v988
    %v991 = vsinq.f32.pop %v988
    %vm992 = vweird.f32 %v899
    %v993 = vand.u32 %v989, 3
    %vm994 = vcmp.lt.s32.totalorder %v993, 2
    %vm995 = vcmp.eq.s32.totalorder %v993, 0
    %v996 = vxor.u32 %v991, 2147483648
    %v997 = vsel %vm995, %v990, %v996
    %vm998 = vcmp.eq.s32.totalorder %v993, 2
    %v999 = vxor.u32 %v990, 2147483648
    %v1000 = vsel %vm998, %v999, %v991
    %v1001 = vsel %vm994, %v997, %v1000
    %v1002 = vsel %vm992, nan, %v1001
    %v1003 = vand.u32 2147483647, %v899
    %vm1004 = vcmp.le.f32.partialorder %v1003, 0.7853982
    %vm1005 = vcmp.lt.s32.totalorder %v899, 0
    %v1006 = vand.u32 %v899, 2139095040
    %v1007 = vshrl.u32 %v1006, 23
    %v1008 = vsub.s32 %v1007, 127
    %v1009 = vand.u32 2147483647, %v899
    %v1010 = vand.u32 %v1009, 8388607
    %v1011 = vor.u32 %v1010, 8388608
    %v1012 = vsub.s32 0, %v1011
    %v1013 = vadd.s32 %v1008, 1
    %vm1014 = vcmp.gt.s32.totalorder %v1013, 0
    %v1015 = vsel %vm1014, %v1013, 0
    %v1016 = vshrl.u32 %v1015, 5
    %v1017 = vand.u32 %v1015, 31
    %v1018 = vsub.s32 32, %v1017
    %v1019 = vshrl.u32 683565275, %v1018
    %v1020 = vshll.u32 683565275, %v1017
    %v1021 = vshrl.u32 2475754826, %v1018
    %v1022 = vor.u32 %v1020, %v1021
    %v1023 = vshll.u32 2475754826, %v1017
    %v1024 = vshrl.u32 2131351028, %v1018
    %v1025 = vor.u32 %v1023, %v1024
    %v1026 = vshll.u32 2131351028, %v1017
    %v1027 = vshrl.u32 2102212464, %v1018
    %v1028 = vor.u32 %v1026, %v1027
    %v1029 = vshll.u32 2102212464, %v1017
    %v1030 = vshrl.u32 920167782, %v1018
    %v1031 = vor.u32 %v1029, %v1030
    %v1032 = vshll.u32 920167782, %v1017
    %v1033 = vshrl.u32 1326507024, %v1018
    %v1034 = vor.u32 %v1032, %v1033
    %vm1035 = vcmp.lt.s32.totalorder %v1016, 1
    %vm1036 = vcmp.lt.s32.totalorder %v1016, 2
    %vm1037 = vcmp.lt.s32.totalorder %v1016, 3
    %vm1038 = vcmp.lt.s32.totalorder %v1016, 4
    %v1039 = vsel %vm1035, %v1019, %v1022
    %v1040 = vsel %vm1038, %v1028, 2102212464
    %v1041 = vsel %vm1037, %v1025, %v1040
    %v1042 = vsel %vm1036, %v1039, %v1041
    %v1043 = vsel %vm1035, %v1022, %v1025
    %v1044 = vsel %vm1038, %v1031, 920167782
    %v1045 = vsel %vm1037, %v1028, %v1044
    %v1046 = vsel %vm1036, %v1043, %v1045
    %v1047 = vsel %vm1035, %v1025, %v1028
    %v1048 = vsel %vm1038, %v1034, 1326507024
    %v1049 = vsel %vm1037, %v1031, %v1048
    %v1050 = vsel %vm1036, %v1047, %v1049
    %v1051 = vshll.u32 %v1011, 8
    %v1052 = vmul.u32.u64.compose %v1051, %v1050
    %v1053 = vextract.low.u32 %v1052
    %v1054 = vextract.high.u32 %v1052
    %v1055 = vmul.u32.u64.compose %v1051, %v1046
    %v1056 = vextract.low.u32 %v1055
    %v1057 = vextract.high.u32 %v1055
    %v1058 = vmul.u32 %v1051, %v1042
    %v1059 = vadd.s32 %v1054, %v1056
    %vm1060 = vc.u32 %v1054, %v1056
    %v1061 = vadd.s32 %v1057, 1
    %v1062 = vsel %vm1060, %v1061, %v1057
    %v1063 = vadd.s32 %v1058, %v1062
    %v1064 = vadd.s32 %v1063, 536870912
    %v1065 = vshrl.u32 %v1064, 30
    %v1066 = vshll.u32 %v1065, 30
    %v1067 = vsub.s32 %v1063, %v1066
    %vm1068 = vcmp.lt.s32.totalorder %v1067, 0
    %v1069 = vsub.s32 0, %v1067
    %v1070 = vsel %vm1068, %v1069, %v1067
    %v1071 = vclz %v1070
    %v1072 = vsub.s32 %v1071, 2
    %vm1073 = vcmp.gt.s32.totalorder 0, %v1072
    %v1074 = vsel %vm1073, 0, %v1072
    %v1075 = vsub.s32 32, %v1074
    %v1076 = vshll.u32 %v1067, %v1074
    %v1077 = vshrl.u32 %v1059, %v1075
    %v1078 = vor.u32 %v1076, %v1077
    %v1079 = vsub.s32 4294967266, %v1074
    %v1080 = vadd.s32 %v1079, 127
    %v1081 = vshll.u32 %v1080, 23
    %v1082 = vor.u32 4788187, %v1081
    %v1083 = vand.u32 2147483647, %v1082
    %v1085 = vcvt.s32.f32 %v1078
    %v1086 = vmul.f32 %v1085, %v1083
    %v1087 = vxor.u32 %v1086, 2147483648
    %v1088 = vsel %vm1005, %v1087, %v1086
    %v1089 = vsub.s32 4, %v1065
    %v1090 = vsel %vm1005, %v1089, %v1065
    %v1091 = vsel %vm1004, %v899, %v1088
    %v1092 = vsel %vm1004, 0, %v1090
    %v1093 = vcosq.f32.pop %v1091
    %v1094 = vsinq.f32.pop %v1091
    %vm1095 = vweird.f32 %v899
    %v1096 = vadd.s32 %v1092, 3
    %v1097 = vand.u32 %v1096, 3
    %vm1098 = vcmp.lt.s32.totalorder %v1097, 2
    %vm1099 = vcmp.eq.s32.totalorder %v1097, 0
    %v1100 = vxor.u32 %v1094, 2147483648
    %v1101 = vsel %vm1099, %v1093, %v1100
    %vm1102 = vcmp.eq.s32.totalorder %v1097, 2
    %v1103 = vxor.u32 %v1093, 2147483648
    %v1104 = vsel %vm1102, %v1103, %v1094
    %v1105 = vsel %vm1098, %v1101, %v1104
    %v1106 = vsel %vm1095, nan, %v1105
    %1108 = vrot.lane.b32.xlu0 %v1002, 127
    %v1109 = vpop.permute.xlu0 %1108
    %v1111 = vmul.f32 %v1002, %v1109
    %1112 = vrot.lane.b32.xlu0 %v1002, 126
    %v1113 = vpop.permute.xlu0 %1112
    %v1115 = vmul.f32 %v1111, %v1113
    %1117 = vrot.lane.b32.xlu0 %v1106, 126
    %v1118 = vpop.permute.xlu0 %1117
    %v1120 = vmul.f32 %v1106, %v1118
    %v1121 = vsub.f32 %v1115, %v1120
    %v1122 = vsub.f32 0.0, %v1002
    %v1123 = vmul.f32 %v1122, %v1109
    %v1124 = vmul.f32 %v1123, %v1118
    %v1125 = vmul.f32 %v1106, %v1113
    %v1126 = vsub.f32 %v1124, %v1125
    %1127 = vrot.lane.b32.xlu0 %v1106, 127
    %v1128 = vpop.permute.xlu0 %1127
    %v1130 = vmul.f32 %v1002, %v1128
    %v1131 = vmul.f32 %v1106, %v1109
    %v1132 = vmul.f32 %v1131, %v1113
    %v1133 = vmul.f32 %v1002, %v1118
    %v1134 = vadd.f32 %v1132, %v1133
    %v1135 = vsub.f32 0.0, %v1106
    %v1136 = vmul.f32 %v1135, %v1109
    %v1137 = vmul.f32 %v1136, %v1118
    %v1138 = vmul.f32 %v1002, %v1113
    %v1139 = vadd.f32 %v1137, %v1138
    %v1140 = vmul.f32 %v1106, %v1128
    %v1141 = vsub.f32 0.0, %v898
    %1143 = vrot.lane.b32.xlu0 %v1141, 124
    %v1144 = vpop.permute.xlu0 %1143
    %v1146 = vmul.f32 %v1121, %v1144
    %1147 = vrot.lane.b32.xlu0 %v1141, 125
    %v1148 = vpop.permute.xlu0 %1147
    %v1150 = vmul.f32 %v1126, %v1148
    %v1151 = vadd.f32 %v1146, %v1150
    %v1152 = vmul.f32 %v1134, %v1144
    %v1153 = vmul.f32 %v1139, %v1148
    %v1154 = vadd.f32 %v1152, %v1153
    %v1155 = vmul.f32 %v1136, %v1148
    %1156 = vrot.lane.b32.xlu0 %v1141, 126
    %v1157 = vpop.permute.xlu0 %1156
    %v1159 = vmul.f32 %v1140, %v1157
    %v1160 = vadd.f32 %v1155, %v1159
    %1162 = vset.pattern.permute.xlu0 0
    %1163 = vperm.xlu0 %1162, %v1121
    %v1164 = vpop.permute.xlu0 %1163
    %v1166 = vsel %vm378, %v1164, 0.0
    %v1167 = vadd.f32 %v1166, 0.0
    %1169 = vset.pattern.permute.xlu0 0
    %1170 = vperm.xlu0 %1169, %v1126
    %v1171 = vpop.permute.xlu0 %1170
    %v1173 = vsel %vm388, %v1171, 0.0
    %v1174 = vadd.f32 %v1167, %v1173
    %1176 = vset.pattern.permute.xlu0 0
    %1177 = vperm.xlu0 %1176, %v1130
    %v1178 = vpop.permute.xlu0 %1177
    %v1180 = vsel %vm398, %v1178, 0.0
    %v1181 = vadd.f32 %v1174, %v1180
    %1183 = vset.pattern.permute.xlu0 0
    %1184 = vperm.xlu0 %1183, %v1151
    %v1185 = vpop.permute.xlu0 %1184
    %v1187 = vsel %vm408, %v1185, 0.0
    %v1188 = vadd.f32 %v1181, %v1187
    %1190 = vset.pattern.permute.xlu0 0
    %1191 = vperm.xlu0 %1190, %v1134
    %v1192 = vpop.permute.xlu0 %1191
    %v1194 = vsel %vm418, %v1192, 0.0
    %v1195 = vadd.f32 %v1188, %v1194
    %1197 = vset.pattern.permute.xlu0 0
    %1198 = vperm.xlu0 %1197, %v1139
    %v1199 = vpop.permute.xlu0 %1198
    %v1201 = vsel %vm428, %v1199, 0.0
    %v1202 = vadd.f32 %v1195, %v1201
    %1204 = vset.pattern.permute.xlu0 0
    %1205 = vperm.xlu0 %1204, %v1140
    %v1206 = vpop.permute.xlu0 %1205
    %v1208 = vsel %vm438, %v1206, 0.0
    %v1209 = vadd.f32 %v1202, %v1208
    %1211 = vset.pattern.permute.xlu0 0
    %1212 = vperm.xlu0 %1211, %v1154
    %v1213 = vpop.permute.xlu0 %1212
    %v1215 = vsel %vm448, %v1213, 0.0
    %v1216 = vadd.f32 %v1209, %v1215
    %1218 = vset.pattern.permute.xlu0 1
    %1219 = vperm.xlu0 %1218, %v1136
    %v1220 = vpop.permute.xlu0 %1219
    %v1222 = vsel %vm458, %v1220, 0.0
    %v1223 = vadd.f32 %v1216, %v1222
    %1224 = vset.pattern.permute.xlu0 1
    %1225 = vperm.xlu0 %1224, %v1140
    %v1226 = vpop.permute.xlu0 %1225
    %v1228 = vsel %vm468, %v1226, 0.0
    %v1229 = vadd.f32 %v1223, %v1228
    %1230 = vset.pattern.permute.xlu0 1
    %1231 = vperm.xlu0 %1230, %v1002
    %v1232 = vpop.permute.xlu0 %1231
    %v1234 = vsel %vm477, %v1232, 0.0
    %v1235 = vadd.f32 %v1229, %v1234
    %1237 = vset.pattern.permute.xlu0 1
    %1238 = vperm.xlu0 %1237, %v1160
    %v1239 = vpop.permute.xlu0 %1238
    %v1241 = vsel %vm486, %v1239, 0.0
    %v1242 = vadd.f32 %v1235, %v1241
    %v1243 = vadd.f32 %v1242, 0.0
    %v1244 = vadd.f32 %v1243, 0.0
    %v1245 = vadd.f32 %v1244, 0.0
    %v1246 = vadd.f32 %v1245, %v500
    %1247 = vst [vmem:[#allocation13] sm:$0x3] %v1246
    // Predicated region
    $region62: #{tpu_custom_call.1} parent=1 // pred_check
      _
    $region63: #{tpu_custom_call.1} parent=1 // pred_check_branch
      %1249 = sbr.rel (0) target = $region65
    $region64: #{tpu_custom_call.1} parent=1 // pred_region
      %s1251 = ssub.s32 32, 32
      %1252 = vsyncadd [#allocation4], %s1251
      %s1254 = sshll.u32 [#allocation13], 4
      %s1255 = int_to_ptr.vmem [resolvable:$true] %s1254
      %1257 = dma.vmem_to_hbm [thread:$0]  %s1255, 32, %s9, [#allocation4]
    $region65: #{tpu_custom_call.1} parent=1 // pred_fallthru
      _
    // Predicated region
    $region66: #{tpu_custom_call.1} parent=1 // pred_check
      _
    $region67: #{tpu_custom_call.1} parent=1 // pred_check_branch
      %1259 = sbr.rel (0) target = $region69
    $region68: #{tpu_custom_call.1} parent=1 // pred_region
      %1260 = dma.done [#allocation4], 32
    $region69: #{tpu_custom_call.1} parent=1 // pred_fallthru
      _
    %1261 = vsyncpa [#allocation3], 1
    %1262 = vsyncpa [#allocation6], 1
    %1263 = vsyncpa [#allocation9], 1
    %1264 = vsyncpa [#allocation12], 1
    %1265 = vsyncpa [#allocation4], 1

</llo_original>
